<compile_context>
chip_gen: v5e
topology: v5e:2x2
jax: 0.10.0
libtpu: 0.0.40
codegen_flags: <defaults>
</compile_context>

<pallas_src>
import functools
import math

import jax
import jax.numpy as jnp
from jax.experimental import pallas as pl
from jax.experimental.pallas import tpu as pltpu

BN_EPS = 1e-5
VMEM_LIMIT_BYTES = 32 * 1024 * 1024   # plenty for whole-image blocks, safe on v5e..v7x


def _round_up(x, m):
    return (x + m - 1) // m * m


def _gelu_exact(x):
    """Exact-erf GELU, sign-select-free form (A&S 7.1.26, |err| <= 1.5e-7).

    gelu(x) = 0.5*(x + |x|*erf(|x|/sqrt(2))) since x*erf(x/sqrt(2)) is even.
    The divide goes to the EUP via pl.reciprocal(approx=True); exp is EUP too.
    Note gelu(0) == 0 exactly (x == |x| == 0), which the corner-layout
    zero-padding invariant of stage 1 relies on.
    """
    a1, a2, a3, a4, a5 = (0.254829592, -0.284496736, 1.421413741,
                          -1.453152027, 1.061405429)
    p = 0.3275911
    ax = jnp.abs(x)
    u = ax * 0.7071067811865476
    t = pl.reciprocal(1.0 + p * u, approx=True)
    poly = ((((a5 * t + a4) * t + a3) * t + a2) * t + a1) * t
    erf_u = 1.0 - poly * jnp.exp(-u * u)
    return 0.5 * (x + ax * erf_u)


# ----------------------------------------------------------------------------
# Kernels
# ----------------------------------------------------------------------------
def _stem_conv1_kernel(p_ref, w_ref, h_ref, s_ref):
    """Stage 1: conv3x3/stride2 (as a tiny im2col matmul) + GELU + BN partials.

    p_ref : (1, K_pad, Np) bf16  im2col patches of one image, corner layout
    w_ref : (Cout, K_pad)  bf16  conv1 weight
    h_ref : (1, Cout, Np)  bf16  pre-BN activation (corner layout, pads == 0)
    s_ref : (1, Cout, 2)   f32   per-image [sum, sum_sq] BN partials
    Padding columns of the patches are zero -> z = 0 -> gelu(0) = 0 exactly,
    so no masking is needed here and the stats stay clean.
    """
    z = jnp.dot(w_ref[...], p_ref[0], preferred_element_type=jnp.float32)
    h = _gelu_exact(z)
    h_ref[0] = h.astype(h_ref.dtype)
    s_ref[0, :, 0:1] = jnp.sum(h, axis=1, keepdims=True)
    s_ref[0, :, 1:2] = jnp.sum(h * h, axis=1, keepdims=True)


def _stem_conv_kernel(x_ref, m_ref, sc_ref, sh_ref, w_ref, h_ref, s_ref, *,
                      wp, np_pix):
    """Stages 2/3: in-kernel BN-apply of the previous stage + shifted-window
    conv3x3/stride1 + GELU + BN partial statistics, one image per grid step.

    x_ref  : (1, Cin, Np)   bf16  previous pre-BN activation, corner layout
    m_ref  : (1, Np)        f32   valid-pixel mask (1 inside HxW, 0 elsewhere)
    sc_ref : (Cin, 1)       f32   previous-stage BN scale (gamma / std)
    sh_ref : (Cin, 1)       f32   previous-stage BN shift (beta - mean*scale)
    w_ref  : (9, Cout, Cin) bf16  per-tap conv weights, tap = ky*3 + kx
    h_ref  : (1, Cout, Np)  bf16  this stage's pre-BN activation (corner layout)
    s_ref  : (1, Cout, 2)   f32   per-image [sum, sum_sq] BN partials
    """
    mask = m_ref[...]                                    # (1, Np)
    x = x_ref[0].astype(jnp.float32)                     # (Cin, Np)
    # Apply previous BatchNorm; the mask keeps garbage / pad positions at
    # exactly 0 (x is already 0 there, only the shift needs masking).
    xn = (x * sc_ref[...] + sh_ref[...] * mask).astype(jnp.bfloat16)

    cin = xn.shape[0]
    halo = wp + 1
    zpad = jnp.zeros((cin, halo), jnp.bfloat16)
    # One wide window; every tap is a static lane-offset slice of it.  Because
    # all non-valid positions of xn are 0, the zero spatial padding of the
    # 3x3 conv is already encoded in the layout.
    xw = jnp.concatenate([zpad, xn, zpad], axis=1)       # (Cin, Np + 2*Wp + 2)

    acc = None
    for tap in range(9):
        ky, kx = tap // 3, tap % 3
        start = ky * wp + kx                             # == halo + (ky-1)*Wp + (kx-1)
        win = xw[:, start:start + np_pix]                # (Cin, Np) bf16
        part = jnp.dot(w_ref[tap], win, preferred_element_type=jnp.float32)
        acc = part if acc is None else acc + part        # (Cout, Np) f32

    h = _gelu_exact(acc) * mask                          # zero out garbage pixels
    h_ref[0] = h.astype(h_ref.dtype)
    s_ref[0, :, 0:1] = jnp.sum(h, axis=1, keepdims=True)
    s_ref[0, :, 1:2] = jnp.sum(h * h, axis=1, keepdims=True)


def _bn_apply_kernel(h_ref, sc_ref, sh_ref, o_ref):
    """Final BatchNorm apply, lane-dense, one image per step, f32 output."""
    o_ref[0] = h_ref[0].astype(jnp.float32) * sc_ref[...] + sh_ref[...]


# ----------------------------------------------------------------------------
# Stage wrappers
# ----------------------------------------------------------------------------
def _stage1(x_nchw, w_oihw, hp, wp, np_pix):
    """conv1 (stride 2) + GELU + BN partials.  The tiny (Cin=3) im2col is kept
    here; its columns are laid out directly on the stage-2/3 corner grid."""
    B, Cin, H, W = x_nchw.shape
    Cout = w_oihw.shape[0]
    H1, W1 = hp - 2, wp - 2

    xp = jnp.pad(x_nchw, ((0, 0), (0, 0), (1, 1), (1, 1)))
    cols = []
    for ky in range(3):
        for kx in range(3):
            cols.append(jax.lax.slice(
                xp, (0, 0, ky, kx),
                (B, Cin, ky + (H1 - 1) * 2 + 1, kx + (W1 - 1) * 2 + 1),
                (1, 1, 2, 2)))                           # (B, Cin, H1, W1)
    K = 9 * Cin
    patches = jnp.stack(cols, axis=1).reshape(B, K, H1, W1)   # k = tap*Cin + c
    patches = jnp.pad(patches, ((0, 0), (0, 0), (0, 2), (0, 2)))   # corner grid
    patches = patches.reshape(B, K, hp * wp)
    K_pad = _round_up(K, 16)                             # bf16 sublane packing
    patches = jnp.pad(patches, ((0, 0), (0, K_pad - K), (0, np_pix - hp * wp)))
    patches = patches.astype(jnp.bfloat16)

    w_mat = jnp.transpose(w_oihw, (0, 2, 3, 1)).reshape(Cout, K)
    w_mat = jnp.pad(w_mat, ((0, 0), (0, K_pad - K))).astype(jnp.bfloat16)

    cost = pl.CostEstimate(
        flops=int(2 * Cout * K_pad * np_pix * B + 50 * Cout * np_pix * B),
        transcendentals=int(2 * Cout * np_pix * B),
        bytes_accessed=int(B * np_pix * (K_pad + Cout) * 2
                           + Cout * K_pad * 2 + B * Cout * 2 * 4))

    h, stats = pl.pallas_call(
        _stem_conv1_kernel,
        out_shape=(jax.ShapeDtypeStruct((B, Cout, np_pix), jnp.bfloat16),
                   jax.ShapeDtypeStruct((B, Cout, 2), jnp.float32)),
        grid=(B,),
        in_specs=[
            pl.BlockSpec((1, K_pad, np_pix), lambda b: (b, 0, 0)),
            pl.BlockSpec((Cout, K_pad), lambda b: (0, 0)),
        ],
        out_specs=(
            pl.BlockSpec((1, Cout, np_pix), lambda b: (b, 0, 0)),
            pl.BlockSpec((1, Cout, 2), lambda b: (b, 0, 0)),
        ),
        compiler_params=pltpu.CompilerParams(
            dimension_semantics=("parallel",),
            vmem_limit_bytes=VMEM_LIMIT_BYTES),
        cost_estimate=cost,
    )(patches, w_mat)
    return h, stats


def _stage23(h_prev, mask, scale_in, shift_in, w_oihw, wp, np_pix):
    """[previous BN applied in-kernel] -> conv3x3/stride1 -> GELU -> BN partials."""
    B, Cin, _ = h_prev.shape
    Cout = w_oihw.shape[0]
    w_taps = jnp.transpose(w_oihw, (2, 3, 0, 1)).reshape(9, Cout, Cin)
    w_taps = w_taps.astype(jnp.bfloat16)

    kernel = functools.partial(_stem_conv_kernel, wp=wp, np_pix=np_pix)
    cost = pl.CostEstimate(
        flops=int(2 * 9 * Cout * Cin * np_pix * B + 60 * Cout * np_pix * B),
        transcendentals=int(2 * Cout * np_pix * B),
        bytes_accessed=int(B * np_pix * (Cin + Cout) * 2 + 9 * Cout * Cin * 2
                           + B * Cout * 2 * 4 + np_pix * 4))

    h, stats = pl.pallas_call(
        kernel,
        out_shape=(jax.ShapeDtypeStruct((B, Cout, np_pix), jnp.bfloat16),
                   jax.ShapeDtypeStruct((B, Cout, 2), jnp.float32)),
        grid=(B,),
        in_specs=[
            pl.BlockSpec((1, Cin, np_pix), lambda b: (b, 0, 0)),
            pl.BlockSpec((1, np_pix), lambda b: (0, 0)),
            pl.BlockSpec((Cin, 1), lambda b: (0, 0)),
            pl.BlockSpec((Cin, 1), lambda b: (0, 0)),
            pl.BlockSpec((9, Cout, Cin), lambda b: (0, 0, 0)),
        ],
        out_specs=(
            pl.BlockSpec((1, Cout, np_pix), lambda b: (b, 0, 0)),
            pl.BlockSpec((1, Cout, 2), lambda b: (b, 0, 0)),
        ),
        compiler_params=pltpu.CompilerParams(
            dimension_semantics=("parallel",),
            vmem_limit_bytes=VMEM_LIMIT_BYTES),
        cost_estimate=cost,
    )(h_prev, mask,
      scale_in.reshape(Cin, 1).astype(jnp.float32),
      shift_in.reshape(Cin, 1).astype(jnp.float32),
      w_taps)
    return h, stats


def _bn_apply(h, scale, shift, np_pix):
    """Final BatchNorm apply; output already batch-major so no transpose left."""
    B, Cout, _ = h.shape
    cost = pl.CostEstimate(
        flops=int(2 * B * Cout * np_pix), transcendentals=0,
        bytes_accessed=int(B * Cout * np_pix * (2 + 4) + Cout * 8))
    return pl.pallas_call(
        _bn_apply_kernel,
        out_shape=jax.ShapeDtypeStruct((B, Cout, np_pix), jnp.float32),
        grid=(B,),
        in_specs=[
            pl.BlockSpec((1, Cout, np_pix), lambda b: (b, 0, 0)),
            pl.BlockSpec((Cout, 1), lambda b: (0, 0)),
            pl.BlockSpec((Cout, 1), lambda b: (0, 0)),
        ],
        out_specs=pl.BlockSpec((1, Cout, np_pix), lambda b: (b, 0, 0)),
        compiler_params=pltpu.CompilerParams(
            dimension_semantics=("parallel",),
            vmem_limit_bytes=VMEM_LIMIT_BYTES),
        cost_estimate=cost,
    )(h, scale.reshape(Cout, 1).astype(jnp.float32),
      shift.reshape(Cout, 1).astype(jnp.float32))


def _bn_affine(stats, gamma, beta, count):
    """BatchNorm2d training-mode batch stats (biased var, eps=1e-5) as a
    per-channel affine (scale, shift), from packed per-image partial sums."""
    s = jnp.sum(stats, axis=0)                           # (Cout, 2)
    mean = s[:, 0] / count
    var = jnp.maximum(s[:, 1] / count - mean * mean, 0.0)
    scale = gamma * jax.lax.rsqrt(var + BN_EPS)
    shift = beta - mean * scale
    return scale, shift


def cmt_stem_forward(x_nchw, params):
    """CMTStem.forward: (B, Cin, H, W) -> (B, Cout, H/2, W/2), NCHW, f32."""
    B, Cin, H, W = x_nchw.shape
    Cout = params["w1"].shape[0]
    H1 = (H + 2 - 3) // 2 + 1
    W1 = (W + 2 - 3) // 2 + 1
    hp, wp = H1 + 2, W1 + 2
    np_pix = _round_up(hp * wp, 128)                     # per-image flat pixels
    count = jnp.float32(B * H1 * W1)

    # Valid-pixel mask on the per-image corner grid (shared by stages 2 and 3).
    pos = jnp.arange(np_pix, dtype=jnp.int32)
    mask = (((pos // wp) < H1) & ((pos % wp) < W1)).astype(jnp.float32)
    mask = mask.reshape(1, np_pix)

    h1, st1 = _stage1(x_nchw, params["w1"], hp, wp, np_pix)
    sc1, sh1 = _bn_affine(st1, params["g1"], params["b1"], count)

    h2, st2 = _stage23(h1, mask, sc1, sh1, params["w2"], wp, np_pix)
    sc2, sh2 = _bn_affine(st2, params["g2"], params["b2"], count)

    h3, st3 = _stage23(h2, mask, sc2, sh2, params["w3"], wp, np_pix)
    sc3, sh3 = _bn_affine(st3, params["g3"], params["b3"], count)

    y = _bn_apply(h3, sc3, sh3, np_pix)                  # (B, Cout, Np) f32
    y = y[:, :, :hp * wp].reshape(B, Cout, hp, wp)[:, :, :H1, :W1]
    return y


# ----------------------------------------------------------------------------
# Parameters / reference / main
# ----------------------------------------------------------------------------
def init_params(key, in_channels, out_channels):
    """Deterministic init mirroring CMTStem.init_weight():
    kaiming_normal_ (fan_in, gain=sqrt(2)) for convs, gamma=1 / beta=0 for BN."""
    k1, k2, k3 = jax.random.split(key, 3)

    def kaiming(k, cout, cin):
        fan_in = cin * 3 * 3
        std = math.sqrt(2.0 / fan_in)
        return std * jax.random.normal(k, (cout, cin, 3, 3), jnp.float32)

    ones = jnp.ones((out_channels,), jnp.float32)
    zeros = jnp.zeros((out_channels,), jnp.float32)
    return dict(
        w1=kaiming(k1, out_channels, in_channels),
        w2=kaiming(k2, out_channels, out_channels),
        w3=kaiming(k3, out_channels, out_channels),
        g1=ones, b1=zeros, g2=ones, b2=zeros, g3=ones, b3=zeros,
    )


def _reference_forward(x, params):
    """Pure-JAX f32 reference: conv3x3 -> exact GELU -> training-mode BatchNorm2d."""
    def stage(x, w, g, b, stride):
        y = jax.lax.conv_general_dilated(
            x, w, (stride, stride), ((1, 1), (1, 1)),
            dimension_numbers=("NCHW", "OIHW", "NCHW"),
            precision=jax.lax.Precision.HIGHEST)
        y = jax.nn.gelu(y, approximate=False)
        mean = jnp.mean(y, axis=(0, 2, 3), keepdims=True)
        var = jnp.var(y, axis=(0, 2, 3), keepdims=True)      # biased, like BN
        return (g[None, :, None, None] * (y - mean) * jax.lax.rsqrt(var + BN_EPS)
                + b[None, :, None, None])
    x = stage(x, params["w1"], params["g1"], params["b1"], 2)
    x = stage(x, params["w2"], params["g2"], params["b2"], 1)
    x = stage(x, params["w3"], params["g3"], params["b3"], 1)
    return x


if __name__ == "__main__":
    key = jax.random.PRNGKey(0)
    kx, kp = jax.random.split(key)

    B, Cin, H, W = 2, 3, 16, 16      # small shapes consistent with the module
    Cout = 32

    x = jax.random.normal(kx, (B, Cin, H, W), jnp.float32)
    params = init_params(kp, Cin, Cout)

    out = jax.jit(cmt_stem_forward)(x, params)
    out = jax.block_until_ready(out)

    assert out.shape == (B, Cout, H // 2, W // 2), out.shape
    assert out.dtype == jnp.float32
    assert bool(jnp.all(jnp.isfinite(out)))

    ref = _reference_forward(x, params)
    max_err = float(jnp.max(jnp.abs(out - ref)))
    # bf16 MXU operands + bf16 inter-stage activation storage (f32 accumulation
    # and BN stats) across three stacked stages; outputs are ~unit-scale after
    # BN, so this is a loose-but-meaningful bound.
    assert max_err < 0.3, f"max |out - ref| = {max_err}"

    print("KERNEL_OK")
</pallas_src>

<mosaic_0001>
module attributes {stable_mosaic.version = 11 : i64} {
  func.func @_stem_conv_kernel(%arg0: i32, %arg1: memref<1x32x128xbf16, #tpu.memory_space<vmem>>, %arg2: memref<1x128xf32, #tpu.memory_space<vmem>>, %arg3: memref<32x1xf32, #tpu.memory_space<vmem>>, %arg4: memref<32x1xf32, #tpu.memory_space<vmem>>, %arg5: memref<9x32x32xbf16, #tpu.memory_space<vmem>>, %arg6: memref<1x32x128xbf16, #tpu.memory_space<vmem>>, %arg7: memref<1x32x2xf32, #tpu.memory_space<vmem>>) attributes {dimension_semantics = [#tpu.dimension_semantics<parallel>], iteration_bounds = array<i64: 2>, scalar_prefetch = 0 : i64, scratch_operands = 0 : i64, tpu.core_type = #tpu.core_type<tc>, window_params = [{transform_indices = @transform_0, window_bounds = array<i64: 1, 32, 128>}, {pipeline_mode = #tpu.pipeline_mode<synchronous>, transform_indices = @transform_1, window_bounds = array<i64: 1, 128>}, {pipeline_mode = #tpu.pipeline_mode<synchronous>, transform_indices = @transform_2, window_bounds = array<i64: 32, 1>}, {pipeline_mode = #tpu.pipeline_mode<synchronous>, transform_indices = @transform_3, window_bounds = array<i64: 32, 1>}, {pipeline_mode = #tpu.pipeline_mode<synchronous>, transform_indices = @transform_4, window_bounds = array<i64: 9, 32, 32>}, {transform_indices = @transform_5, window_bounds = array<i64: 1, 32, 128>}, {transform_indices = @transform_6, window_bounds = array<i64: 1, 32, 2>}]} {
    %c0 = arith.constant 0 : index
    %c0_0 = arith.constant 0 : index
    %0 = vector.load %arg2[%c0, %c0_0] : memref<1x128xf32, #tpu.memory_space<vmem>>, vector<1x128xf32>
    %c0_1 = arith.constant 0 : index
    %c0_2 = arith.constant 0 : index
    %c0_3 = arith.constant 0 : index
    %1 = vector.load %arg1[%c0_1, %c0_2, %c0_3] : memref<1x32x128xbf16, #tpu.memory_space<vmem>>, vector<1x32x128xbf16>
    %2 = vector.shape_cast %1 : vector<1x32x128xbf16> to vector<32x128xbf16>
    %3 = arith.extf %2 : vector<32x128xbf16> to vector<32x128xf32>
    %c0_4 = arith.constant 0 : index
    %c0_5 = arith.constant 0 : index
    %4 = vector.load %arg3[%c0_4, %c0_5] : memref<32x1xf32, #tpu.memory_space<vmem>>, vector<32x1xf32>
    %5 = vector.broadcast %4 : vector<32x1xf32> to vector<32x128xf32>
    %6 = arith.mulf %3, %5 : vector<32x128xf32>
    %c0_6 = arith.constant 0 : index
    %c0_7 = arith.constant 0 : index
    %7 = vector.load %arg4[%c0_6, %c0_7] : memref<32x1xf32, #tpu.memory_space<vmem>>, vector<32x1xf32>
    %8 = vector.broadcast %7 : vector<32x1xf32> to vector<32x128xf32>
    %9 = vector.broadcast %0 : vector<1x128xf32> to vector<32x128xf32>
    %10 = arith.mulf %8, %9 : vector<32x128xf32>
    %11 = arith.addf %6, %10 : vector<32x128xf32>
    %12 = arith.truncf %11 : vector<32x128xf32> to vector<32x128xbf16>
    %cst = arith.constant 0.000000e+00 : bf16
    %13 = vector.broadcast %cst : bf16 to vector<32x11xbf16>
    %14 = tpu.concatenate %13, %12, %13 in 1 : vector<32x11xbf16>, vector<32x128xbf16>, vector<32x11xbf16> -> vector<32x150xbf16>
    %15 = vector.extract_strided_slice %14 {offsets = [0, 0], sizes = [32, 128], strides = [1, 1]} : vector<32x150xbf16> to vector<32x128xbf16>
    %c0_8 = arith.constant 0 : index
    %c0_9 = arith.constant 0 : index
    %c0_10 = arith.constant 0 : index
    %16 = vector.load %arg5[%c0_8, %c0_9, %c0_10] : memref<9x32x32xbf16, #tpu.memory_space<vmem>>, vector<1x32x32xbf16>
    %17 = vector.shape_cast %16 : vector<1x32x32xbf16> to vector<32x32xbf16>
    %cst_11 = arith.constant dense<0.000000e+00> : vector<32x128xf32>
    %18 = tpu.matmul %17, %15, %cst_11 {dimension_numbers = #tpu.dot_dimension_numbers<[1], [0], [0], [1], [0, 0, 1, 1], [], []>} : vector<32x32xbf16>, vector<32x128xbf16>, vector<32x128xf32> -> vector<32x128xf32>
    %19 = vector.extract_strided_slice %14 {offsets = [0, 1], sizes = [32, 128], strides = [1, 1]} : vector<32x150xbf16> to vector<32x128xbf16>
    %c1 = arith.constant 1 : index
    %c0_12 = arith.constant 0 : index
    %c0_13 = arith.constant 0 : index
    %20 = vector.load %arg5[%c1, %c0_12, %c0_13] : memref<9x32x32xbf16, #tpu.memory_space<vmem>>, vector<1x32x32xbf16>
    %21 = vector.shape_cast %20 : vector<1x32x32xbf16> to vector<32x32xbf16>
    %cst_14 = arith.constant dense<0.000000e+00> : vector<32x128xf32>
    %22 = tpu.matmul %21, %19, %cst_14 {dimension_numbers = #tpu.dot_dimension_numbers<[1], [0], [0], [1], [0, 0, 1, 1], [], []>} : vector<32x32xbf16>, vector<32x128xbf16>, vector<32x128xf32> -> vector<32x128xf32>
    %23 = arith.addf %18, %22 : vector<32x128xf32>
    %24 = vector.extract_strided_slice %14 {offsets = [0, 2], sizes = [32, 128], strides = [1, 1]} : vector<32x150xbf16> to vector<32x128xbf16>
    %c2 = arith.constant 2 : index
    %c0_15 = arith.constant 0 : index
    %c0_16 = arith.constant 0 : index
    %25 = vector.load %arg5[%c2, %c0_15, %c0_16] : memref<9x32x32xbf16, #tpu.memory_space<vmem>>, vector<1x32x32xbf16>
    %26 = vector.shape_cast %25 : vector<1x32x32xbf16> to vector<32x32xbf16>
    %cst_17 = arith.constant dense<0.000000e+00> : vector<32x128xf32>
    %27 = tpu.matmul %26, %24, %cst_17 {dimension_numbers = #tpu.dot_dimension_numbers<[1], [0], [0], [1], [0, 0, 1, 1], [], []>} : vector<32x32xbf16>, vector<32x128xbf16>, vector<32x128xf32> -> vector<32x128xf32>
    %28 = arith.addf %23, %27 : vector<32x128xf32>
    %29 = vector.extract_strided_slice %14 {offsets = [0, 10], sizes = [32, 128], strides = [1, 1]} : vector<32x150xbf16> to vector<32x128xbf16>
    %c3 = arith.constant 3 : index
    %c0_18 = arith.constant 0 : index
    %c0_19 = arith.constant 0 : index
    %30 = vector.load %arg5[%c3, %c0_18, %c0_19] : memref<9x32x32xbf16, #tpu.memory_space<vmem>>, vector<1x32x32xbf16>
    %31 = vector.shape_cast %30 : vector<1x32x32xbf16> to vector<32x32xbf16>
    %cst_20 = arith.constant dense<0.000000e+00> : vector<32x128xf32>
    %32 = tpu.matmul %31, %29, %cst_20 {dimension_numbers = #tpu.dot_dimension_numbers<[1], [0], [0], [1], [0, 0, 1, 1], [], []>} : vector<32x32xbf16>, vector<32x128xbf16>, vector<32x128xf32> -> vector<32x128xf32>
    %33 = arith.addf %28, %32 : vector<32x128xf32>
    %34 = vector.extract_strided_slice %14 {offsets = [0, 11], sizes = [32, 128], strides = [1, 1]} : vector<32x150xbf16> to vector<32x128xbf16>
    %c4 = arith.constant 4 : index
    %c0_21 = arith.constant 0 : index
    %c0_22 = arith.constant 0 : index
    %35 = vector.load %arg5[%c4, %c0_21, %c0_22] : memref<9x32x32xbf16, #tpu.memory_space<vmem>>, vector<1x32x32xbf16>
    %36 = vector.shape_cast %35 : vector<1x32x32xbf16> to vector<32x32xbf16>
    %cst_23 = arith.constant dense<0.000000e+00> : vector<32x128xf32>
    %37 = tpu.matmul %36, %34, %cst_23 {dimension_numbers = #tpu.dot_dimension_numbers<[1], [0], [0], [1], [0, 0, 1, 1], [], []>} : vector<32x32xbf16>, vector<32x128xbf16>, vector<32x128xf32> -> vector<32x128xf32>
    %38 = arith.addf %33, %37 : vector<32x128xf32>
    %39 = vector.extract_strided_slice %14 {offsets = [0, 12], sizes = [32, 128], strides = [1, 1]} : vector<32x150xbf16> to vector<32x128xbf16>
    %c5 = arith.constant 5 : index
    %c0_24 = arith.constant 0 : index
    %c0_25 = arith.constant 0 : index
    %40 = vector.load %arg5[%c5, %c0_24, %c0_25] : memref<9x32x32xbf16, #tpu.memory_space<vmem>>, vector<1x32x32xbf16>
    %41 = vector.shape_cast %40 : vector<1x32x32xbf16> to vector<32x32xbf16>
    %cst_26 = arith.constant dense<0.000000e+00> : vector<32x128xf32>
    %42 = tpu.matmul %41, %39, %cst_26 {dimension_numbers = #tpu.dot_dimension_numbers<[1], [0], [0], [1], [0, 0, 1, 1], [], []>} : vector<32x32xbf16>, vector<32x128xbf16>, vector<32x128xf32> -> vector<32x128xf32>
    %43 = arith.addf %38, %42 : vector<32x128xf32>
    %44 = vector.extract_strided_slice %14 {offsets = [0, 20], sizes = [32, 128], strides = [1, 1]} : vector<32x150xbf16> to vector<32x128xbf16>
    %c6 = arith.constant 6 : index
    %c0_27 = arith.constant 0 : index
    %c0_28 = arith.constant 0 : index
    %45 = vector.load %arg5[%c6, %c0_27, %c0_28] : memref<9x32x32xbf16, #tpu.memory_space<vmem>>, vector<1x32x32xbf16>
    %46 = vector.shape_cast %45 : vector<1x32x32xbf16> to vector<32x32xbf16>
    %cst_29 = arith.constant dense<0.000000e+00> : vector<32x128xf32>
    %47 = tpu.matmul %46, %44, %cst_29 {dimension_numbers = #tpu.dot_dimension_numbers<[1], [0], [0], [1], [0, 0, 1, 1], [], []>} : vector<32x32xbf16>, vector<32x128xbf16>, vector<32x128xf32> -> vector<32x128xf32>
    %48 = arith.addf %43, %47 : vector<32x128xf32>
    %49 = vector.extract_strided_slice %14 {offsets = [0, 21], sizes = [32, 128], strides = [1, 1]} : vector<32x150xbf16> to vector<32x128xbf16>
    %c7 = arith.constant 7 : index
    %c0_30 = arith.constant 0 : index
    %c0_31 = arith.constant 0 : index
    %50 = vector.load %arg5[%c7, %c0_30, %c0_31] : memref<9x32x32xbf16, #tpu.memory_space<vmem>>, vector<1x32x32xbf16>
    %51 = vector.shape_cast %50 : vector<1x32x32xbf16> to vector<32x32xbf16>
    %cst_32 = arith.constant dense<0.000000e+00> : vector<32x128xf32>
    %52 = tpu.matmul %51, %49, %cst_32 {dimension_numbers = #tpu.dot_dimension_numbers<[1], [0], [0], [1], [0, 0, 1, 1], [], []>} : vector<32x32xbf16>, vector<32x128xbf16>, vector<32x128xf32> -> vector<32x128xf32>
    %53 = arith.addf %48, %52 : vector<32x128xf32>
    %54 = vector.extract_strided_slice %14 {offsets = [0, 22], sizes = [32, 128], strides = [1, 1]} : vector<32x150xbf16> to vector<32x128xbf16>
    %c8 = arith.constant 8 : index
    %c0_33 = arith.constant 0 : index
    %c0_34 = arith.constant 0 : index
    %55 = vector.load %arg5[%c8, %c0_33, %c0_34] : memref<9x32x32xbf16, #tpu.memory_space<vmem>>, vector<1x32x32xbf16>
    %56 = vector.shape_cast %55 : vector<1x32x32xbf16> to vector<32x32xbf16>
    %cst_35 = arith.constant dense<0.000000e+00> : vector<32x128xf32>
    %57 = tpu.matmul %56, %54, %cst_35 {dimension_numbers = #tpu.dot_dimension_numbers<[1], [0], [0], [1], [0, 0, 1, 1], [], []>} : vector<32x32xbf16>, vector<32x128xbf16>, vector<32x128xf32> -> vector<32x128xf32>
    %58 = arith.addf %53, %57 : vector<32x128xf32>
    %59 = math.absf %58 : vector<32x128xf32>
    %cst_36 = arith.constant 0.707106769 : f32
    %60 = vector.broadcast %cst_36 : f32 to vector<32x128xf32>
    %61 = arith.mulf %59, %60 : vector<32x128xf32>
    %cst_37 = arith.constant 0.327591091 : f32
    %62 = vector.broadcast %cst_37 : f32 to vector<32x128xf32>
    %63 = arith.mulf %62, %61 : vector<32x128xf32>
    %cst_38 = arith.constant 1.000000e+00 : f32
    %64 = vector.broadcast %cst_38 : f32 to vector<32x128xf32>
    %65 = arith.addf %64, %63 : vector<32x128xf32>
    %66 = tpu.reciprocal %65 {approx = true} : vector<32x128xf32> -> vector<32x128xf32>
    %cst_39 = arith.constant 1.06140542 : f32
    %67 = vector.broadcast %cst_39 : f32 to vector<32x128xf32>
    %68 = arith.mulf %67, %66 : vector<32x128xf32>
    %cst_40 = arith.constant -1.45315206 : f32
    %69 = vector.broadcast %cst_40 : f32 to vector<32x128xf32>
    %70 = arith.addf %68, %69 : vector<32x128xf32>
    %71 = arith.mulf %70, %66 : vector<32x128xf32>
    %cst_41 = arith.constant 1.42141378 : f32
    %72 = vector.broadcast %cst_41 : f32 to vector<32x128xf32>
    %73 = arith.addf %71, %72 : vector<32x128xf32>
    %74 = arith.mulf %73, %66 : vector<32x128xf32>
    %cst_42 = arith.constant -0.284496725 : f32
    %75 = vector.broadcast %cst_42 : f32 to vector<32x128xf32>
    %76 = arith.addf %74, %75 : vector<32x128xf32>
    %77 = arith.mulf %76, %66 : vector<32x128xf32>
    %cst_43 = arith.constant 0.254829586 : f32
    %78 = vector.broadcast %cst_43 : f32 to vector<32x128xf32>
    %79 = arith.addf %77, %78 : vector<32x128xf32>
    %80 = arith.mulf %79, %66 : vector<32x128xf32>
    %cst_44 = arith.constant 0.000000e+00 : f32
    %81 = vector.broadcast %cst_44 : f32 to vector<32x128xf32>
    %82 = arith.subf %81, %61 : vector<32x128xf32>
    %83 = arith.mulf %82, %61 : vector<32x128xf32>
    %84 = math.exp %83 : vector<32x128xf32>
    %85 = arith.mulf %80, %84 : vector<32x128xf32>
    %cst_45 = arith.constant 1.000000e+00 : f32
    %86 = vector.broadcast %cst_45 : f32 to vector<32x128xf32>
    %87 = arith.subf %86, %85 : vector<32x128xf32>
    %88 = arith.mulf %59, %87 : vector<32x128xf32>
    %89 = arith.addf %58, %88 : vector<32x128xf32>
    %cst_46 = arith.constant 5.000000e-01 : f32
    %90 = vector.broadcast %cst_46 : f32 to vector<32x128xf32>
    %91 = arith.mulf %90, %89 : vector<32x128xf32>
    %92 = vector.broadcast %0 : vector<1x128xf32> to vector<32x128xf32>
    %93 = arith.mulf %91, %92 : vector<32x128xf32>
    %94 = arith.truncf %93 : vector<32x128xf32> to vector<32x128xbf16>
    %c0_47 = arith.constant 0 : index
    %c0_48 = arith.constant 0 : index
    %c0_49 = arith.constant 0 : index
    %95 = vector.load %arg6[%c0_47, %c0_48, %c0_49] : memref<1x32x128xbf16, #tpu.memory_space<vmem>>, vector<1x32x128xbf16>
    %96 = vector.shape_cast %95 : vector<1x32x128xbf16> to vector<32x128xbf16>
    %97 = vector.shape_cast %94 : vector<32x128xbf16> to vector<1x32x128xbf16>
    tpu.vector_store %arg6[%c0_47, %c0_48, %c0_49], %97 {strides = array<i32>} : memref<1x32x128xbf16, #tpu.memory_space<vmem>>, vector<1x32x128xbf16>,
    %cst_50 = arith.constant dense<0.000000e+00> : vector<32xf32>
    %98 = vector.multi_reduction <add>, %93, %cst_50 [1] : vector<32x128xf32> to vector<32xf32>
    %99 = vector.shape_cast %98 : vector<32xf32> to vector<32x1xf32>
    %c0_51 = arith.constant 0 : index
    %c0_52 = arith.constant 0 : index
    %c0_53 = arith.constant 0 : index
    %100 = vector.load %arg7[%c0_51, %c0_52, %c0_53] : memref<1x32x2xf32, #tpu.memory_space<vmem>>, vector<1x32x1xf32>
    %101 = vector.shape_cast %100 : vector<1x32x1xf32> to vector<32x1xf32>
    %102 = vector.shape_cast %99 : vector<32x1xf32> to vector<1x32x1xf32>
    tpu.vector_store %arg7[%c0_51, %c0_52, %c0_53], %102 {strides = array<i32>} : memref<1x32x2xf32, #tpu.memory_space<vmem>>, vector<1x32x1xf32>,
    %103 = arith.mulf %93, %93 : vector<32x128xf32>
    %cst_54 = arith.constant dense<0.000000e+00> : vector<32xf32>
    %104 = vector.multi_reduction <add>, %103, %cst_54 [1] : vector<32x128xf32> to vector<32xf32>
    %105 = vector.shape_cast %104 : vector<32xf32> to vector<32x1xf32>
    %c0_55 = arith.constant 0 : index
    %c0_56 = arith.constant 0 : index
    %c1_57 = arith.constant 1 : index
    %106 = vector.load %arg7[%c0_55, %c0_56, %c1_57] : memref<1x32x2xf32, #tpu.memory_space<vmem>>, vector<1x32x1xf32>
    %107 = vector.shape_cast %106 : vector<1x32x1xf32> to vector<32x1xf32>
    %108 = vector.shape_cast %105 : vector<32x1xf32> to vector<1x32x1xf32>
    tpu.vector_store %arg7[%c0_55, %c0_56, %c1_57], %108 {strides = array<i32>} : memref<1x32x2xf32, #tpu.memory_space<vmem>>, vector<1x32x1xf32>,
    return
  }
  func.func @transform_0(%arg0: i32) -> (i32, i32, i32) {
    %c0_i32 = arith.constant 0 : i32
    %c0_i32_0 = arith.constant 0 : i32
    %c0_i32_1 = arith.constant 0 : i32
    return %arg0, %c0_i32, %c0_i32_0 : i32, i32, i32
  }
  func.func @transform_1(%arg0: i32) -> (i32, i32) {
    %c0_i32 = arith.constant 0 : i32
    %c0_i32_0 = arith.constant 0 : i32
    %c0_i32_1 = arith.constant 0 : i32
    return %c0_i32, %c0_i32_0 : i32, i32
  }
  func.func @transform_2(%arg0: i32) -> (i32, i32) {
    %c0_i32 = arith.constant 0 : i32
    %c0_i32_0 = arith.constant 0 : i32
    %c0_i32_1 = arith.constant 0 : i32
    return %c0_i32, %c0_i32_0 : i32, i32
  }
  func.func @transform_3(%arg0: i32) -> (i32, i32) {
    %c0_i32 = arith.constant 0 : i32
    %c0_i32_0 = arith.constant 0 : i32
    %c0_i32_1 = arith.constant 0 : i32
    return %c0_i32, %c0_i32_0 : i32, i32
  }
  func.func @transform_4(%arg0: i32) -> (i32, i32, i32) {
    %c0_i32 = arith.constant 0 : i32
    %c0_i32_0 = arith.constant 0 : i32
    %c0_i32_1 = arith.constant 0 : i32
    %c0_i32_2 = arith.constant 0 : i32
    return %c0_i32, %c0_i32_0, %c0_i32_1 : i32, i32, i32
  }
  func.func @transform_5(%arg0: i32) -> (i32, i32, i32) {
    %c0_i32 = arith.constant 0 : i32
    %c0_i32_0 = arith.constant 0 : i32
    %c0_i32_1 = arith.constant 0 : i32
    return %arg0, %c0_i32, %c0_i32_0 : i32, i32, i32
  }
  func.func @transform_6(%arg0: i32) -> (i32, i32, i32) {
    %c0_i32 = arith.constant 0 : i32
    %c0_i32_0 = arith.constant 0 : i32
    %c0_i32_1 = arith.constant 0 : i32
    return %arg0, %c0_i32, %c0_i32_0 : i32, i32, i32
  }
}

module attributes {stable_mosaic.version = 11 : i64} {
  func.func @_stem_conv1_kernel(%arg0: i32, %arg1: memref<1x32x128xbf16, #tpu.memory_space<vmem>>, %arg2: memref<32x32xbf16, #tpu.memory_space<vmem>>, %arg3: memref<1x32x128xbf16, #tpu.memory_space<vmem>>, %arg4: memref<1x32x2xf32, #tpu.memory_space<vmem>>) attributes {dimension_semantics = [#tpu.dimension_semantics<parallel>], iteration_bounds = array<i64: 2>, scalar_prefetch = 0 : i64, scratch_operands = 0 : i64, tpu.core_type = #tpu.core_type<tc>, window_params = [{transform_indices = @transform_0, window_bounds = array<i64: 1, 32, 128>}, {pipeline_mode = #tpu.pipeline_mode<synchronous>, transform_indices = @transform_1, window_bounds = array<i64: 32, 32>}, {transform_indices = @transform_2, window_bounds = array<i64: 1, 32, 128>}, {transform_indices = @transform_3, window_bounds = array<i64: 1, 32, 2>}]} {
    %c0 = arith.constant 0 : index
    %c0_0 = arith.constant 0 : index
    %0 = vector.load %arg2[%c0, %c0_0] : memref<32x32xbf16, #tpu.memory_space<vmem>>, vector<32x32xbf16>
    %c0_1 = arith.constant 0 : index
    %c0_2 = arith.constant 0 : index
    %c0_3 = arith.constant 0 : index
    %1 = vector.load %arg1[%c0_1, %c0_2, %c0_3] : memref<1x32x128xbf16, #tpu.memory_space<vmem>>, vector<1x32x128xbf16>
    %2 = vector.shape_cast %1 : vector<1x32x128xbf16> to vector<32x128xbf16>
    %cst = arith.constant dense<0.000000e+00> : vector<32x128xf32>
    %3 = tpu.matmul %0, %2, %cst {dimension_numbers = #tpu.dot_dimension_numbers<[1], [0], [0], [1], [0, 0, 1, 1], [], []>} : vector<32x32xbf16>, vector<32x128xbf16>, vector<32x128xf32> -> vector<32x128xf32>
    %4 = math.absf %3 : vector<32x128xf32>
    %cst_4 = arith.constant 0.707106769 : f32
    %5 = vector.broadcast %cst_4 : f32 to vector<32x128xf32>
    %6 = arith.mulf %4, %5 : vector<32x128xf32>
    %cst_5 = arith.constant 0.327591091 : f32
    %7 = vector.broadcast %cst_5 : f32 to vector<32x128xf32>
    %8 = arith.mulf %7, %6 : vector<32x128xf32>
    %cst_6 = arith.constant 1.000000e+00 : f32
    %9 = vector.broadcast %cst_6 : f32 to vector<32x128xf32>
    %10 = arith.addf %9, %8 : vector<32x128xf32>
    %11 = tpu.reciprocal %10 {approx = true} : vector<32x128xf32> -> vector<32x128xf32>
    %cst_7 = arith.constant 1.06140542 : f32
    %12 = vector.broadcast %cst_7 : f32 to vector<32x128xf32>
    %13 = arith.mulf %12, %11 : vector<32x128xf32>
    %cst_8 = arith.constant -1.45315206 : f32
    %14 = vector.broadcast %cst_8 : f32 to vector<32x128xf32>
    %15 = arith.addf %13, %14 : vector<32x128xf32>
    %16 = arith.mulf %15, %11 : vector<32x128xf32>
    %cst_9 = arith.constant 1.42141378 : f32
    %17 = vector.broadcast %cst_9 : f32 to vector<32x128xf32>
    %18 = arith.addf %16, %17 : vector<32x128xf32>
    %19 = arith.mulf %18, %11 : vector<32x128xf32>
    %cst_10 = arith.constant -0.284496725 : f32
    %20 = vector.broadcast %cst_10 : f32 to vector<32x128xf32>
    %21 = arith.addf %19, %20 : vector<32x128xf32>
    %22 = arith.mulf %21, %11 : vector<32x128xf32>
    %cst_11 = arith.constant 0.254829586 : f32
    %23 = vector.broadcast %cst_11 : f32 to vector<32x128xf32>
    %24 = arith.addf %22, %23 : vector<32x128xf32>
    %25 = arith.mulf %24, %11 : vector<32x128xf32>
    %cst_12 = arith.constant 0.000000e+00 : f32
    %26 = vector.broadcast %cst_12 : f32 to vector<32x128xf32>
    %27 = arith.subf %26, %6 : vector<32x128xf32>
    %28 = arith.mulf %27, %6 : vector<32x128xf32>
    %29 = math.exp %28 : vector<32x128xf32>
    %30 = arith.mulf %25, %29 : vector<32x128xf32>
    %cst_13 = arith.constant 1.000000e+00 : f32
    %31 = vector.broadcast %cst_13 : f32 to vector<32x128xf32>
    %32 = arith.subf %31, %30 : vector<32x128xf32>
    %33 = arith.mulf %4, %32 : vector<32x128xf32>
    %34 = arith.addf %3, %33 : vector<32x128xf32>
    %cst_14 = arith.constant 5.000000e-01 : f32
    %35 = vector.broadcast %cst_14 : f32 to vector<32x128xf32>
    %36 = arith.mulf %35, %34 : vector<32x128xf32>
    %37 = arith.truncf %36 : vector<32x128xf32> to vector<32x128xbf16>
    %c0_15 = arith.constant 0 : index
    %c0_16 = arith.constant 0 : index
    %c0_17 = arith.constant 0 : index
    %38 = vector.load %arg3[%c0_15, %c0_16, %c0_17] : memref<1x32x128xbf16, #tpu.memory_space<vmem>>, vector<1x32x128xbf16>
    %39 = vector.shape_cast %38 : vector<1x32x128xbf16> to vector<32x128xbf16>
    %40 = vector.shape_cast %37 : vector<32x128xbf16> to vector<1x32x128xbf16>
    tpu.vector_store %arg3[%c0_15, %c0_16, %c0_17], %40 {strides = array<i32>} : memref<1x32x128xbf16, #tpu.memory_space<vmem>>, vector<1x32x128xbf16>,
    %cst_18 = arith.constant dense<0.000000e+00> : vector<32xf32>
    %41 = vector.multi_reduction <add>, %36, %cst_18 [1] : vector<32x128xf32> to vector<32xf32>
    %42 = vector.shape_cast %41 : vector<32xf32> to vector<32x1xf32>
    %c0_19 = arith.constant 0 : index
    %c0_20 = arith.constant 0 : index
    %c0_21 = arith.constant 0 : index
    %43 = vector.load %arg4[%c0_19, %c0_20, %c0_21] : memref<1x32x2xf32, #tpu.memory_space<vmem>>, vector<1x32x1xf32>
    %44 = vector.shape_cast %43 : vector<1x32x1xf32> to vector<32x1xf32>
    %45 = vector.shape_cast %42 : vector<32x1xf32> to vector<1x32x1xf32>
    tpu.vector_store %arg4[%c0_19, %c0_20, %c0_21], %45 {strides = array<i32>} : memref<1x32x2xf32, #tpu.memory_space<vmem>>, vector<1x32x1xf32>,
    %46 = arith.mulf %36, %36 : vector<32x128xf32>
    %cst_22 = arith.constant dense<0.000000e+00> : vector<32xf32>
    %47 = vector.multi_reduction <add>, %46, %cst_22 [1] : vector<32x128xf32> to vector<32xf32>
    %48 = vector.shape_cast %47 : vector<32xf32> to vector<32x1xf32>
    %c0_23 = arith.constant 0 : index
    %c0_24 = arith.constant 0 : index
    %c1 = arith.constant 1 : index
    %49 = vector.load %arg4[%c0_23, %c0_24, %c1] : memref<1x32x2xf32, #tpu.memory_space<vmem>>, vector<1x32x1xf32>
    %50 = vector.shape_cast %49 : vector<1x32x1xf32> to vector<32x1xf32>
    %51 = vector.shape_cast %48 : vector<32x1xf32> to vector<1x32x1xf32>
    tpu.vector_store %arg4[%c0_23, %c0_24, %c1], %51 {strides = array<i32>} : memref<1x32x2xf32, #tpu.memory_space<vmem>>, vector<1x32x1xf32>,
    return
  }
  func.func @transform_0(%arg0: i32) -> (i32, i32, i32) {
    %c0_i32 = arith.constant 0 : i32
    %c0_i32_0 = arith.constant 0 : i32
    %c0_i32_1 = arith.constant 0 : i32
    return %arg0, %c0_i32, %c0_i32_0 : i32, i32, i32
  }
  func.func @transform_1(%arg0: i32) -> (i32, i32) {
    %c0_i32 = arith.constant 0 : i32
    %c0_i32_0 = arith.constant 0 : i32
    %c0_i32_1 = arith.constant 0 : i32
    return %c0_i32, %c0_i32_0 : i32, i32
  }
  func.func @transform_2(%arg0: i32) -> (i32, i32, i32) {
    %c0_i32 = arith.constant 0 : i32
    %c0_i32_0 = arith.constant 0 : i32
    %c0_i32_1 = arith.constant 0 : i32
    return %arg0, %c0_i32, %c0_i32_0 : i32, i32, i32
  }
  func.func @transform_3(%arg0: i32) -> (i32, i32, i32) {
    %c0_i32 = arith.constant 0 : i32
    %c0_i32_0 = arith.constant 0 : i32
    %c0_i32_1 = arith.constant 0 : i32
    return %arg0, %c0_i32, %c0_i32_0 : i32, i32, i32
  }
}

module attributes {stable_mosaic.version = 11 : i64} {
  func.func @_bn_apply_kernel(%arg0: i32, %arg1: memref<1x32x128xbf16, #tpu.memory_space<vmem>>, %arg2: memref<32x1xf32, #tpu.memory_space<vmem>>, %arg3: memref<32x1xf32, #tpu.memory_space<vmem>>, %arg4: memref<1x32x128xf32, #tpu.memory_space<vmem>>) attributes {dimension_semantics = [#tpu.dimension_semantics<parallel>], iteration_bounds = array<i64: 2>, scalar_prefetch = 0 : i64, scratch_operands = 0 : i64, tpu.core_type = #tpu.core_type<tc>, window_params = [{transform_indices = @transform_0, window_bounds = array<i64: 1, 32, 128>}, {pipeline_mode = #tpu.pipeline_mode<synchronous>, transform_indices = @transform_1, window_bounds = array<i64: 32, 1>}, {pipeline_mode = #tpu.pipeline_mode<synchronous>, transform_indices = @transform_2, window_bounds = array<i64: 32, 1>}, {transform_indices = @transform_3, window_bounds = array<i64: 1, 32, 128>}]} {
    %c0 = arith.constant 0 : index
    %c0_0 = arith.constant 0 : index
    %c0_1 = arith.constant 0 : index
    %0 = vector.load %arg1[%c0, %c0_0, %c0_1] : memref<1x32x128xbf16, #tpu.memory_space<vmem>>, vector<1x32x128xbf16>
    %1 = vector.shape_cast %0 : vector<1x32x128xbf16> to vector<32x128xbf16>
    %2 = arith.extf %1 : vector<32x128xbf16> to vector<32x128xf32>
    %c0_2 = arith.constant 0 : index
    %c0_3 = arith.constant 0 : index
    %3 = vector.load %arg2[%c0_2, %c0_3] : memref<32x1xf32, #tpu.memory_space<vmem>>, vector<32x1xf32>
    %4 = vector.broadcast %3 : vector<32x1xf32> to vector<32x128xf32>
    %5 = arith.mulf %2, %4 : vector<32x128xf32>
    %c0_4 = arith.constant 0 : index
    %c0_5 = arith.constant 0 : index
    %6 = vector.load %arg3[%c0_4, %c0_5] : memref<32x1xf32, #tpu.memory_space<vmem>>, vector<32x1xf32>
    %7 = vector.broadcast %6 : vector<32x1xf32> to vector<32x128xf32>
    %8 = arith.addf %5, %7 : vector<32x128xf32>
    %c0_6 = arith.constant 0 : index
    %c0_7 = arith.constant 0 : index
    %c0_8 = arith.constant 0 : index
    %9 = vector.load %arg4[%c0_6, %c0_7, %c0_8] : memref<1x32x128xf32, #tpu.memory_space<vmem>>, vector<1x32x128xf32>
    %10 = vector.shape_cast %9 : vector<1x32x128xf32> to vector<32x128xf32>
    %11 = vector.shape_cast %8 : vector<32x128xf32> to vector<1x32x128xf32>
    tpu.vector_store %arg4[%c0_6, %c0_7, %c0_8], %11 {strides = array<i32>} : memref<1x32x128xf32, #tpu.memory_space<vmem>>, vector<1x32x128xf32>,
    return
  }
  func.func @transform_0(%arg0: i32) -> (i32, i32, i32) {
    %c0_i32 = arith.constant 0 : i32
    %c0_i32_0 = arith.constant 0 : i32
    %c0_i32_1 = arith.constant 0 : i32
    return %arg0, %c0_i32, %c0_i32_0 : i32, i32, i32
  }
  func.func @transform_1(%arg0: i32) -> (i32, i32) {
    %c0_i32 = arith.constant 0 : i32
    %c0_i32_0 = arith.constant 0 : i32
    %c0_i32_1 = arith.constant 0 : i32
    return %c0_i32, %c0_i32_0 : i32, i32
  }
  func.func @transform_2(%arg0: i32) -> (i32, i32) {
    %c0_i32 = arith.constant 0 : i32
    %c0_i32_0 = arith.constant 0 : i32
    %c0_i32_1 = arith.constant 0 : i32
    return %c0_i32, %c0_i32_0 : i32, i32
  }
  func.func @transform_3(%arg0: i32) -> (i32, i32, i32) {
    %c0_i32 = arith.constant 0 : i32
    %c0_i32_0 = arith.constant 0 : i32
    %c0_i32_1 = arith.constant 0 : i32
    return %arg0, %c0_i32, %c0_i32_0 : i32, i32, i32
  }
}

</mosaic_0001>

<llo_original>
// kernel: cmt_stem_forward.4
$region0: #{cmt_stem_forward.4}
  #allocation0 [shape = 'u32[]', space=smem, size = 0x4, offset = 0x4, fixed_abs, tag = 'smem constant byte address 0x4 - core index']
  #allocation1 [shape = 'u32[72,128]{1,0:T(1,128)}', space=vmem, size = 0x9000, scoped, tag = 'internal scratch']
  %s0 = inlined_call_operand.vmem [shape: bf16[2,32,128], index: 0, kind: input, shape index: {}]
  %s1 = inlined_call_operand.vmem [shape: bf16[32,32], index: 1, kind: input, shape index: {}]
  %s2 = inlined_call_operand.vmem [shape: bf16[2,32,128], index: 2, kind: output, shape index: {0}]
  %s3 = inlined_call_operand.vmem [shape: f32[2,32,2], index: 3, kind: output, shape index: {1}]
  %4 = xla_tuple %s2, %s3
  %s5 = sld [smem:[#allocation0]]
  $region49: #{cmt_stem_forward.4} parent=0
    _
  %s7 = ssub.s32 1, %s5
  %s8 = scalar_select 0, %s7, %s5
  loop: start=0, step=1, limit=4
  $region2: #{cmt_stem_forward.4} parent=0 // loop_pre_header
    _
  $region3: #{cmt_stem_forward.4} parent=0 // loop_header
    %s10 = sphi 0, %s14
    %p11 = scmp.ge.s32.totalorder %s10, 4
    %s20 = sphi 0, %s22
    %s23 = sphi 0, %s20
    %s24 = sphi 0, %s23
    %s40 = sphi 0, %s24
    %s44 = sphi 0, %s44
    %s46 = sphi 0, %s44
    %s47 = sphi 0, %s46
    %s61 = sphi 0, %s47
    %s67 = sphi 0, %s69
    %s70 = sphi 0, %s67
    %s71 = sphi 0, %s70
    %s87 = sphi 0, %s71
    %s93 = sphi 0, %s95
    %s96 = sphi 0, %s93
    %s97 = sphi 0, %s96
    %s113 = sphi 0, %s97
  $region4: #{cmt_stem_forward.4} parent=0 // loop_header_branch
    %13 = sbr.rel (%p11) target = $region8
  $region5: #{cmt_stem_forward.4} parent=0 // loop_body
    %s15 = ssub.s32 %s10, 1
    %s16 = ssub.s32 %s10, 2
    %s17 = sadd.s32 %s10, 1
    %s18 = ssub.s32 %s10, %s17
    %p19 = scmp.eq.s32.totalorder %s18, 0
    %s21 = sadd.s32 %s20, 1
    %s22 = scalar_select %p19, %s20, %s21
    %p25 = pneg %p19
    %p26 = scmp.eq.s32.totalorder %s10, 1
    %p27 = por %p25, %p26
    %p28 = scmp.ne.s32.totalorder %s20, %s23
    %p29 = scmp.eq.s32.totalorder %s10, 0
    %p30 = por %p28, %p29
    %p31 = scmp.ne.s32.totalorder %s20, %s23
    %p32 = scmp.eq.s32.totalorder %s15, 1
    %p33 = por %p31, %p32
    %p34 = scmp.ne.s32.totalorder %s23, %s24
    %p35 = scmp.eq.s32.totalorder %s15, 0
    %p36 = por %p34, %p35
    %p37 = scmp.ne.s32.totalorder %s23, %s24
    %p38 = scmp.eq.s32.totalorder %s16, 1
    %p39 = por %p37, %p38
    %p41 = scmp.ne.s32.totalorder %s24, %s40
    %p42 = scmp.eq.s32.totalorder %s16, 0
    %p43 = por %p41, %p42
    %s45 = sadd.s32 %s44, 1
    %p48 = scmp.eq.s32.totalorder %s10, 1
    %p49 = scmp.ne.s32.totalorder %s44, %s46
    %p50 = scmp.eq.s32.totalorder %s10, 0
    %p51 = por %p49, %p50
    %p52 = scmp.ne.s32.totalorder %s44, %s46
    %p53 = scmp.eq.s32.totalorder %s15, 1
    %p54 = por %p52, %p53
    %p55 = scmp.ne.s32.totalorder %s46, %s47
    %p56 = scmp.eq.s32.totalorder %s15, 0
    %p57 = por %p55, %p56
    %p58 = scmp.ne.s32.totalorder %s46, %s47
    %p59 = scmp.eq.s32.totalorder %s16, 1
    %p60 = por %p58, %p59
    %p62 = scmp.ne.s32.totalorder %s47, %s61
    %p63 = scmp.eq.s32.totalorder %s16, 0
    %p64 = por %p62, %p63
    %s65 = ssub.s32 %s10, %s17
    %p66 = scmp.eq.s32.totalorder %s65, 0
    %s68 = sadd.s32 %s67, 1
    %s69 = scalar_select %p66, %s67, %s68
    %p72 = pneg %p66
    %p73 = scmp.eq.s32.totalorder %s10, 1
    %p74 = por %p72, %p73
    %p75 = scmp.ne.s32.totalorder %s67, %s70
    %p76 = scmp.eq.s32.totalorder %s10, 0
    %p77 = por %p75, %p76
    %p78 = scmp.ne.s32.totalorder %s67, %s70
    %p79 = scmp.eq.s32.totalorder %s15, 1
    %p80 = por %p78, %p79
    %p81 = scmp.ne.s32.totalorder %s70, %s71
    %p82 = scmp.eq.s32.totalorder %s15, 0
    %p83 = por %p81, %p82
    %p84 = scmp.ne.s32.totalorder %s70, %s71
    %p85 = scmp.eq.s32.totalorder %s16, 1
    %p86 = por %p84, %p85
    %p88 = scmp.ne.s32.totalorder %s71, %s87
    %p89 = scmp.eq.s32.totalorder %s16, 0
    %p90 = por %p88, %p89
    %s91 = ssub.s32 %s10, %s17
    %p92 = scmp.eq.s32.totalorder %s91, 0
    %s94 = sadd.s32 %s93, 1
    %s95 = scalar_select %p92, %s93, %s94
    %p98 = pneg %p92
    %p99 = scmp.eq.s32.totalorder %s10, 1
    %p100 = por %p98, %p99
    %p101 = scmp.ne.s32.totalorder %s93, %s96
    %p102 = scmp.eq.s32.totalorder %s10, 0
    %p103 = por %p101, %p102
    %p104 = scmp.ne.s32.totalorder %s93, %s96
    %p105 = scmp.eq.s32.totalorder %s15, 1
    %p106 = por %p104, %p105
    %p107 = scmp.ne.s32.totalorder %s96, %s97
    %p108 = scmp.eq.s32.totalorder %s15, 0
    %p109 = por %p107, %p108
    %p110 = scmp.ne.s32.totalorder %s96, %s97
    %p111 = scmp.eq.s32.totalorder %s16, 1
    %p112 = por %p110, %p111
    %p114 = scmp.ne.s32.totalorder %s97, %s113
    %p115 = scmp.eq.s32.totalorder %s16, 0
    %p116 = por %p114, %p115
    %p117 = scmp.le.s32.totalorder 1, %s10
    %p118 = scmp.lt.s32.totalorder %s10, 3
    %p119 = pnand %p117, %p118
    %p120 = pneg %p119
    // Predicated region
    $region9: #{cmt_stem_forward.4} parent=5 // pred_check
      _
    $region10: #{cmt_stem_forward.4} parent=5 // pred_check_branch
      %122 = sbr.rel (%p119) target = $region12
    $region11: #{cmt_stem_forward.4} parent=5 // pred_region
      %s123 = ssub.s32 %s10, 1
      // Predicated region
      $region13: #{cmt_stem_forward.4} parent=11 // pred_check
        %p124 = pneg %p57
      $region14: #{cmt_stem_forward.4} parent=11 // pred_check_branch
        %126 = sbr.rel (%p124) target = $region16
      $region15: #{cmt_stem_forward.4} parent=11 // pred_region
        _
      $region16: #{cmt_stem_forward.4} parent=11 // pred_fallthru
        _
    $region12: #{cmt_stem_forward.4} parent=5 // pred_fallthru
      _
    %p127 = scmp.lt.s32.totalorder %s10, 2
    // Predicated region
    $region17: #{cmt_stem_forward.4} parent=5 // pred_check
      %p128 = pneg %p127
    $region18: #{cmt_stem_forward.4} parent=5 // pred_check_branch
      %130 = sbr.rel (%p128) target = $region20
    $region19: #{cmt_stem_forward.4} parent=5 // pred_region
      // Predicated region
      $region21: #{cmt_stem_forward.4} parent=19 // pred_check
        %p131 = pneg %p30
      $region22: #{cmt_stem_forward.4} parent=19 // pred_check_branch
        %133 = sbr.rel (%p131) target = $region24
      $region23: #{cmt_stem_forward.4} parent=19 // pred_region
        %p134 = scmp.lt.s32.totalorder %s10, 1
        %s135 = scalar_select %p134, %s10, 1
        %s136 = smul.addr %s135, 4
        %s137 = smul.addr %s136, 4
        %s138 = scalar_lea.vmem %s0, %s137
      $region24: #{cmt_stem_forward.4} parent=19 // pred_fallthru
        _
    $region20: #{cmt_stem_forward.4} parent=5 // pred_fallthru
      _
    %p139 = scmp.le.s32.totalorder 1, %s10
    %p140 = scmp.lt.s32.totalorder %s10, 3
    %p141 = pnand %p139, %p140
    %p142 = pneg %p141
    // Predicated region
    $region25: #{cmt_stem_forward.4} parent=5 // pred_check
      _
    $region26: #{cmt_stem_forward.4} parent=5 // pred_check_branch
      %144 = sbr.rel (%p141) target = $region28
    $region27: #{cmt_stem_forward.4} parent=5 // pred_region
      %s145 = ssub.s32 %s10, 1
      %p146 = scmp.lt.s32.totalorder %s15, 1
      %s147 = scalar_select %p146, %s15, 1
      %s148 = smul.addr %s147, 4
      %s149 = smul.addr %s148, 4
      %s150 = scalar_lea.vmem %s0, %s149
      %p151 = pneg %p36
      %p152 = pneg %p33
      %p153 = pneg %p57
      %p154 = pneg %p54
      %p155 = pneg %p83
      %p156 = pneg %p80
      %p157 = scmp.lt.s32.totalorder %s15, 1
      %s158 = scalar_select %p157, %s15, 1
      %s159 = smul.addr %s158, 4
      %s160 = smul.addr %s159, 4
      %s161 = scalar_lea.vmem %s2, %s160
      %p162 = pneg %p109
      %p163 = pneg %p106
      %p164 = scmp.lt.s32.totalorder %s15, 1
      %s165 = scalar_select %p164, %s15, 1
      %s166 = smul.addr %s165, 4
      %s167 = smul.addr %s166, 8
      %s168 = scalar_lea.vmem %s3, %s167
      %p169 = scmp.lt.s32.totalorder %s15, 1
      %s170 = scalar_select %p169, %s15, 1
      %s171 = smul.addr %s170, 4
      %s172 = smul.addr %s171, 4
      %s173 = scalar_lea.vmem %s0, %s172
      %p174 = scmp.lt.s32.totalorder %s15, 1
      %s175 = scalar_select %p174, %s15, 1
      %s176 = smul.addr %s175, 4
      %s177 = smul.addr %s176, 4
      %s178 = scalar_lea.vmem %s2, %s177
      %p179 = scmp.lt.s32.totalorder %s15, 1
      %s180 = scalar_select %p179, %s15, 1
      %s181 = smul.addr %s180, 4
      %s182 = smul.addr %s181, 8
      %s183 = scalar_lea.vmem %s3, %s182
      %v185 = vld [vmem:[%s1] sm:$0xf]
      %v186 = vld [vmem:[%s1 + $0x4] sm:$0xf]
      %v187 = vld [vmem:[%s1 + $0x8] sm:$0xf]
      %v188 = vld [vmem:[%s1 + $0xc] sm:$0xf]
      %v189 = vld [vmem:[%s173] sm:$0xf]
      %v190 = vld [vmem:[%s173 + $0x4] sm:$0xf]
      %v191 = vld [vmem:[%s173 + $0x8] sm:$0xf]
      %v192 = vld [vmem:[%s173 + $0xc] sm:$0xf]
      %v197 = vunpack.c.l.b16 %v185
      %v198 = vunpack.c.l.b16 %v186
      %v199 = vunpack.c.l.b16 %v187
      %v200 = vunpack.c.l.b16 %v188
      %v201 = vpack.c.b16 %v198, %v197
      %v202 = vpack.c.b16 %v200, %v199
      %v207 = vunpack.c.l.b16 %v189
      %v208 = vunpack.c.l.b16 %v190
      %v209 = vunpack.c.l.b16 %v191
      %v210 = vunpack.c.l.b16 %v192
      %v211 = vpack.c.b16 %v208, %v207
      %v212 = vpack.c.b16 %v210, %v209
      %vm215 = vcmask 261120
      %v217 = vsel %vm215, %v201, 0
      %v220 = vsel %vm215, %v202, 0
      %222 = vmatpush.bf16.msra.mxu0 0
      %223 = vmatpush.bf16.msra.mxu0 0
      %224 = vmatpush.bf16.msra.mxu0 0
      %225 = vmatpush.bf16.msra.mxu0 0
      %226 = vmatpush.bf16.msra.mxu0 0
      %227 = vmatpush.bf16.msra.mxu0 0
      %228 = vmatpush.bf16.msra.mxu0 %v212
      %229 = vmatpush.bf16.msra.mxu0 %v211
      %230 = vmatmul.bf16.gmra.mxu0 %v217
      %v231 = vpop.f32.mrf.mxu0
      %v232 = vadd.f32 0.0, %v231
      %v233 = vpop.f32.mrf.mxu0
      %v234 = vadd.f32 0.0, %v233
      %235 = vmatmul.bf16.gmra.mxu0 %v220
      %v236 = vpop.f32.mrf.mxu0
      %v237 = vadd.f32 0.0, %v236
      %v238 = vpop.f32.mrf.mxu0
      %v239 = vadd.f32 0.0, %v238
      %240 = vdwg.mxu0
      %v241 = vand.u32 2147483647, %v232
      %v242 = vand.u32 2147483647, %v234
      %v243 = vand.u32 2147483647, %v237
      %v244 = vand.u32 2147483647, %v239
      %v245 = vmul.f32 %v241, 0.70710677
      %v246 = vmul.f32 %v242, 0.70710677
      %v247 = vmul.f32 %v243, 0.70710677
      %v248 = vmul.f32 %v244, 0.70710677
      %v249 = vmul.f32 %v245, 0.3275911
      %v250 = vmul.f32 %v246, 0.3275911
      %v251 = vmul.f32 %v247, 0.3275911
      %v252 = vmul.f32 %v248, 0.3275911
      %v253 = vadd.f32 %v249, 1.0
      %v254 = vadd.f32 %v250, 1.0
      %v255 = vadd.f32 %v251, 1.0
      %v256 = vadd.f32 %v252, 1.0
      %v257 = vrcp.pop %v253
      %v258 = vrcp.pop %v254
      %v259 = vrcp.pop %v255
      %v260 = vrcp.pop %v256
      %v261 = vmul.f32 %v257, 1.0614054
      %v262 = vmul.f32 %v258, 1.0614054
      %v263 = vmul.f32 %v259, 1.0614054
      %v264 = vmul.f32 %v260, 1.0614054
      %v265 = vadd.f32 %v261, -1.4531521
      %v266 = vadd.f32 %v262, -1.4531521
      %v267 = vadd.f32 %v263, -1.4531521
      %v268 = vadd.f32 %v264, -1.4531521
      %v269 = vmul.f32 %v265, %v257
      %v270 = vmul.f32 %v266, %v258
      %v271 = vmul.f32 %v267, %v259
      %v272 = vmul.f32 %v268, %v260
      %v273 = vadd.f32 %v269, 1.4214138
      %v274 = vadd.f32 %v270, 1.4214138
      %v275 = vadd.f32 %v271, 1.4214138
      %v276 = vadd.f32 %v272, 1.4214138
      %v277 = vmul.f32 %v273, %v257
      %v278 = vmul.f32 %v274, %v258
      %v279 = vmul.f32 %v275, %v259
      %v280 = vmul.f32 %v276, %v260
      %v281 = vadd.f32 %v277, -0.28449672
      %v282 = vadd.f32 %v278, -0.28449672
      %v283 = vadd.f32 %v279, -0.28449672
      %v284 = vadd.f32 %v280, -0.28449672
      %v285 = vmul.f32 %v281, %v257
      %v286 = vmul.f32 %v282, %v258
      %v287 = vmul.f32 %v283, %v259
      %v288 = vmul.f32 %v284, %v260
      %v289 = vadd.f32 %v285, 0.2548296
      %v290 = vadd.f32 %v286, 0.2548296
      %v291 = vadd.f32 %v287, 0.2548296
      %v292 = vadd.f32 %v288, 0.2548296
      %v293 = vmul.f32 %v289, %v257
      %v294 = vmul.f32 %v290, %v258
      %v295 = vmul.f32 %v291, %v259
      %v296 = vmul.f32 %v292, %v260
      %v297 = vsub.f32 0.0, %v245
      %v298 = vsub.f32 0.0, %v246
      %v299 = vsub.f32 0.0, %v247
      %v300 = vsub.f32 0.0, %v248
      %v301 = vmul.f32 %v297, %v245
      %v302 = vmul.f32 %v298, %v246
      %v303 = vmul.f32 %v299, %v247
      %v304 = vmul.f32 %v300, %v248
      %v305 = vmul.f32 %v301, 1.442695
      %v306 = vpow.pop %v305
      %v307 = vmul.f32 %v302, 1.442695
      %v308 = vpow.pop %v307
      %v309 = vmul.f32 %v303, 1.442695
      %v310 = vpow.pop %v309
      %v311 = vmul.f32 %v304, 1.442695
      %v312 = vpow.pop %v311
      %v313 = vmul.f32 %v293, %v306
      %v314 = vmul.f32 %v294, %v308
      %v315 = vmul.f32 %v295, %v310
      %v316 = vmul.f32 %v296, %v312
      %v317 = vsub.f32 1.0, %v313
      %v318 = vsub.f32 1.0, %v314
      %v319 = vsub.f32 1.0, %v315
      %v320 = vsub.f32 1.0, %v316
      %v321 = vmul.f32 %v241, %v317
      %v322 = vmul.f32 %v242, %v318
      %v323 = vmul.f32 %v243, %v319
      %v324 = vmul.f32 %v244, %v320
      %v325 = vadd.f32 %v232, %v321
      %v326 = vadd.f32 %v234, %v322
      %v327 = vadd.f32 %v237, %v323
      %v328 = vadd.f32 %v239, %v324
      %v329 = vmul.f32 %v325, 0.5
      %v330 = vmul.f32 %v326, 0.5
      %v331 = vmul.f32 %v327, 0.5
      %v332 = vmul.f32 %v328, 0.5
      %v333 = vpack.c.bf16 %v329, %v329
      %v334 = vpack.c.bf16 %v330, %v330
      %v335 = vpack.c.bf16 %v331, %v331
      %v336 = vpack.c.bf16 %v332, %v332
      %337 = vst [vmem:[%s178] sm:$0xf] %v333
      %338 = vst [vmem:[%s178 + $0x4] sm:$0xf] %v334
      %339 = vst [vmem:[%s178 + $0x8] sm:$0xf] %v335
      %340 = vst [vmem:[%s178 + $0xc] sm:$0xf] %v336
      %341 = vadd.xlane.f32.xlu0 %v329
      %v342 = vpop.xlane.xlu0 %341
      %343 = vadd.xlane.f32.xlu0 %v330
      %v344 = vpop.xlane.xlu0 %343
      %345 = vadd.xlane.f32.xlu0 %v331
      %v346 = vpop.xlane.xlu0 %345
      %347 = vadd.xlane.f32.xlu0 %v332
      %v348 = vpop.xlane.xlu0 %347
      %vm349 = vcmask 7168
      %350 = vst.msk [vmem:[%s183] sm:$0xff] %vm349, %v342
      %351 = vst.msk [vmem:[%s183 + $0x8] sm:$0xff] %vm349, %v344
      %352 = vst.msk [vmem:[%s183 + $0x10] sm:$0xff] %vm349, %v346
      %353 = vst.msk [vmem:[%s183 + $0x18] sm:$0xff] %vm349, %v348
      %v354 = vmul.f32 %v329, %v329
      %v355 = vmul.f32 %v330, %v330
      %v356 = vmul.f32 %v331, %v331
      %v357 = vmul.f32 %v332, %v332
      %358 = vadd.xlane.f32.xlu0 %v354
      %v359 = vpop.xlane.xlu0 %358
      %360 = vadd.xlane.f32.xlu0 %v355
      %v361 = vpop.xlane.xlu0 %360
      %362 = vadd.xlane.f32.xlu0 %v356
      %v363 = vpop.xlane.xlu0 %362
      %364 = vadd.xlane.f32.xlu0 %v357
      %v365 = vpop.xlane.xlu0 %364
      %vm366 = vcmask 15368
      %367 = vst.msk [vmem:[%s183] sm:$0xff] %vm366, %v359
      %368 = vst.msk [vmem:[%s183 + $0x8] sm:$0xff] %vm366, %v361
      %369 = vst.msk [vmem:[%s183 + $0x10] sm:$0xff] %vm366, %v363
      %370 = vst.msk [vmem:[%s183 + $0x18] sm:$0xff] %vm366, %v365
      %p371 = scmp.lt.s32.totalorder %s15, 1
      %s372 = scalar_select %p371, %s15, 1
      %s373 = smul.addr %s372, 4
      %s374 = smul.addr %s373, 4
      %s375 = scalar_lea.vmem %s2, %s374
      %p376 = scmp.lt.s32.totalorder %s15, 1
      %s377 = scalar_select %p376, %s15, 1
      %s378 = smul.addr %s377, 4
      %s379 = smul.addr %s378, 8
      %s380 = scalar_lea.vmem %s3, %s379
      // Predicated region
      $region29: #{cmt_stem_forward.4} parent=27 // pred_check
        %p381 = pneg %p80
      $region30: #{cmt_stem_forward.4} parent=27 // pred_check_branch
        %383 = sbr.rel (%p381) target = $region32
      $region31: #{cmt_stem_forward.4} parent=27 // pred_region
        _
      $region32: #{cmt_stem_forward.4} parent=27 // pred_fallthru
        _
      // Predicated region
      $region33: #{cmt_stem_forward.4} parent=27 // pred_check
        %p384 = pneg %p106
      $region34: #{cmt_stem_forward.4} parent=27 // pred_check_branch
        %386 = sbr.rel (%p384) target = $region36
      $region35: #{cmt_stem_forward.4} parent=27 // pred_region
        _
      $region36: #{cmt_stem_forward.4} parent=27 // pred_fallthru
        _
    $region28: #{cmt_stem_forward.4} parent=5 // pred_fallthru
      _
    %p387 = scmp.le.s32.totalorder 2, %s10
    // Predicated region
    $region37: #{cmt_stem_forward.4} parent=5 // pred_check
      %p388 = pneg %p387
    $region38: #{cmt_stem_forward.4} parent=5 // pred_check_branch
      %390 = sbr.rel (%p388) target = $region40
    $region39: #{cmt_stem_forward.4} parent=5 // pred_region
      %s391 = ssub.s32 %s10, 2
      // Predicated region
      $region41: #{cmt_stem_forward.4} parent=39 // pred_check
        %p392 = pneg %p86
      $region42: #{cmt_stem_forward.4} parent=39 // pred_check_branch
        %394 = sbr.rel (%p392) target = $region44
      $region43: #{cmt_stem_forward.4} parent=39 // pred_region
        %p395 = scmp.lt.s32.totalorder %s16, 1
        %s396 = scalar_select %p395, %s16, 1
        %s397 = smul.addr %s396, 4
        %s398 = smul.addr %s397, 4
        %s399 = scalar_lea.vmem %s2, %s398
      $region44: #{cmt_stem_forward.4} parent=39 // pred_fallthru
        _
      // Predicated region
      $region45: #{cmt_stem_forward.4} parent=39 // pred_check
        %p400 = pneg %p112
      $region46: #{cmt_stem_forward.4} parent=39 // pred_check_branch
        %402 = sbr.rel (%p400) target = $region48
      $region47: #{cmt_stem_forward.4} parent=39 // pred_region
        %p403 = scmp.lt.s32.totalorder %s16, 1
        %s404 = scalar_select %p403, %s16, 1
        %s405 = smul.addr %s404, 4
        %s406 = smul.addr %s405, 8
        %s407 = scalar_lea.vmem %s3, %s406
      $region48: #{cmt_stem_forward.4} parent=39 // pred_fallthru
        _
    $region40: #{cmt_stem_forward.4} parent=5 // pred_fallthru
      _
  $region6: #{cmt_stem_forward.4} parent=0 // loop_footer
    %s14 = sadd.s32 1, %s10
  $region7: #{cmt_stem_forward.4} parent=0 // loop_footer_branch
    %9 = sbr.rel target = $region3
  $region8: #{cmt_stem_forward.4} parent=0 // loop_exit
    _

// kernel: cmt_stem_forward.7
$region0: #{cmt_stem_forward.7}
  #allocation0 [shape = 'u32[]', space=smem, size = 0x4, offset = 0x4, fixed_abs, tag = 'smem constant byte address 0x4 - core index']
  #allocation1 [shape = 'u32[72,128]{1,0:T(1,128)}', space=vmem, size = 0x9000, scoped, tag = 'internal scratch']
  %s0 = inlined_call_operand.vmem [shape: bf16[2,32,128], index: 0, kind: input, shape index: {}]
  %s1 = inlined_call_operand.vmem [shape: f32[32,1], index: 1, kind: input, shape index: {}]
  %s2 = inlined_call_operand.vmem [shape: f32[32,1], index: 2, kind: input, shape index: {}]
  %s3 = inlined_call_operand.vmem [shape: f32[2,32,128], index: 3, kind: output, shape index: {}]
  %s4 = sld [smem:[#allocation0]]
  $region45: #{cmt_stem_forward.7} parent=0
    _
  %s6 = ssub.s32 1, %s4
  %s7 = scalar_select 0, %s6, %s4
  loop: start=0, step=1, limit=4
  $region2: #{cmt_stem_forward.7} parent=0 // loop_pre_header
    _
  $region3: #{cmt_stem_forward.7} parent=0 // loop_header
    %s9 = sphi 0, %s13
    %p10 = scmp.ge.s32.totalorder %s9, 4
    %s19 = sphi 0, %s21
    %s22 = sphi 0, %s19
    %s23 = sphi 0, %s22
    %s39 = sphi 0, %s23
    %s43 = sphi 0, %s43
    %s45 = sphi 0, %s43
    %s46 = sphi 0, %s45
    %s60 = sphi 0, %s46
    %s64 = sphi 0, %s64
    %s66 = sphi 0, %s64
    %s67 = sphi 0, %s66
    %s81 = sphi 0, %s67
    %s87 = sphi 0, %s89
    %s90 = sphi 0, %s87
    %s91 = sphi 0, %s90
    %s107 = sphi 0, %s91
  $region4: #{cmt_stem_forward.7} parent=0 // loop_header_branch
    %12 = sbr.rel (%p10) target = $region8
  $region5: #{cmt_stem_forward.7} parent=0 // loop_body
    %s14 = ssub.s32 %s9, 1
    %s15 = ssub.s32 %s9, 2
    %s16 = sadd.s32 %s9, 1
    %s17 = ssub.s32 %s9, %s16
    %p18 = scmp.eq.s32.totalorder %s17, 0
    %s20 = sadd.s32 %s19, 1
    %s21 = scalar_select %p18, %s19, %s20
    %p24 = pneg %p18
    %p25 = scmp.eq.s32.totalorder %s9, 1
    %p26 = por %p24, %p25
    %p27 = scmp.ne.s32.totalorder %s19, %s22
    %p28 = scmp.eq.s32.totalorder %s9, 0
    %p29 = por %p27, %p28
    %p30 = scmp.ne.s32.totalorder %s19, %s22
    %p31 = scmp.eq.s32.totalorder %s14, 1
    %p32 = por %p30, %p31
    %p33 = scmp.ne.s32.totalorder %s22, %s23
    %p34 = scmp.eq.s32.totalorder %s14, 0
    %p35 = por %p33, %p34
    %p36 = scmp.ne.s32.totalorder %s22, %s23
    %p37 = scmp.eq.s32.totalorder %s15, 1
    %p38 = por %p36, %p37
    %p40 = scmp.ne.s32.totalorder %s23, %s39
    %p41 = scmp.eq.s32.totalorder %s15, 0
    %p42 = por %p40, %p41
    %s44 = sadd.s32 %s43, 1
    %p47 = scmp.eq.s32.totalorder %s9, 1
    %p48 = scmp.ne.s32.totalorder %s43, %s45
    %p49 = scmp.eq.s32.totalorder %s9, 0
    %p50 = por %p48, %p49
    %p51 = scmp.ne.s32.totalorder %s43, %s45
    %p52 = scmp.eq.s32.totalorder %s14, 1
    %p53 = por %p51, %p52
    %p54 = scmp.ne.s32.totalorder %s45, %s46
    %p55 = scmp.eq.s32.totalorder %s14, 0
    %p56 = por %p54, %p55
    %p57 = scmp.ne.s32.totalorder %s45, %s46
    %p58 = scmp.eq.s32.totalorder %s15, 1
    %p59 = por %p57, %p58
    %p61 = scmp.ne.s32.totalorder %s46, %s60
    %p62 = scmp.eq.s32.totalorder %s15, 0
    %p63 = por %p61, %p62
    %s65 = sadd.s32 %s64, 1
    %p68 = scmp.eq.s32.totalorder %s9, 1
    %p69 = scmp.ne.s32.totalorder %s64, %s66
    %p70 = scmp.eq.s32.totalorder %s9, 0
    %p71 = por %p69, %p70
    %p72 = scmp.ne.s32.totalorder %s64, %s66
    %p73 = scmp.eq.s32.totalorder %s14, 1
    %p74 = por %p72, %p73
    %p75 = scmp.ne.s32.totalorder %s66, %s67
    %p76 = scmp.eq.s32.totalorder %s14, 0
    %p77 = por %p75, %p76
    %p78 = scmp.ne.s32.totalorder %s66, %s67
    %p79 = scmp.eq.s32.totalorder %s15, 1
    %p80 = por %p78, %p79
    %p82 = scmp.ne.s32.totalorder %s67, %s81
    %p83 = scmp.eq.s32.totalorder %s15, 0
    %p84 = por %p82, %p83
    %s85 = ssub.s32 %s9, %s16
    %p86 = scmp.eq.s32.totalorder %s85, 0
    %s88 = sadd.s32 %s87, 1
    %s89 = scalar_select %p86, %s87, %s88
    %p92 = pneg %p86
    %p93 = scmp.eq.s32.totalorder %s9, 1
    %p94 = por %p92, %p93
    %p95 = scmp.ne.s32.totalorder %s87, %s90
    %p96 = scmp.eq.s32.totalorder %s9, 0
    %p97 = por %p95, %p96
    %p98 = scmp.ne.s32.totalorder %s87, %s90
    %p99 = scmp.eq.s32.totalorder %s14, 1
    %p100 = por %p98, %p99
    %p101 = scmp.ne.s32.totalorder %s90, %s91
    %p102 = scmp.eq.s32.totalorder %s14, 0
    %p103 = por %p101, %p102
    %p104 = scmp.ne.s32.totalorder %s90, %s91
    %p105 = scmp.eq.s32.totalorder %s15, 1
    %p106 = por %p104, %p105
    %p108 = scmp.ne.s32.totalorder %s91, %s107
    %p109 = scmp.eq.s32.totalorder %s15, 0
    %p110 = por %p108, %p109
    %p111 = scmp.le.s32.totalorder 1, %s9
    %p112 = scmp.lt.s32.totalorder %s9, 3
    %p113 = pnand %p111, %p112
    %p114 = pneg %p113
    // Predicated region
    $region9: #{cmt_stem_forward.7} parent=5 // pred_check
      _
    $region10: #{cmt_stem_forward.7} parent=5 // pred_check_branch
      %116 = sbr.rel (%p113) target = $region12
    $region11: #{cmt_stem_forward.7} parent=5 // pred_region
      %s117 = ssub.s32 %s9, 1
      // Predicated region
      $region13: #{cmt_stem_forward.7} parent=11 // pred_check
        %p118 = pneg %p56
      $region14: #{cmt_stem_forward.7} parent=11 // pred_check_branch
        %120 = sbr.rel (%p118) target = $region16
      $region15: #{cmt_stem_forward.7} parent=11 // pred_region
        _
      $region16: #{cmt_stem_forward.7} parent=11 // pred_fallthru
        _
      // Predicated region
      $region17: #{cmt_stem_forward.7} parent=11 // pred_check
        %p121 = pneg %p77
      $region18: #{cmt_stem_forward.7} parent=11 // pred_check_branch
        %123 = sbr.rel (%p121) target = $region20
      $region19: #{cmt_stem_forward.7} parent=11 // pred_region
        _
      $region20: #{cmt_stem_forward.7} parent=11 // pred_fallthru
        _
    $region12: #{cmt_stem_forward.7} parent=5 // pred_fallthru
      _
    %p124 = scmp.lt.s32.totalorder %s9, 2
    // Predicated region
    $region21: #{cmt_stem_forward.7} parent=5 // pred_check
      %p125 = pneg %p124
    $region22: #{cmt_stem_forward.7} parent=5 // pred_check_branch
      %127 = sbr.rel (%p125) target = $region24
    $region23: #{cmt_stem_forward.7} parent=5 // pred_region
      // Predicated region
      $region25: #{cmt_stem_forward.7} parent=23 // pred_check
        %p128 = pneg %p29
      $region26: #{cmt_stem_forward.7} parent=23 // pred_check_branch
        %130 = sbr.rel (%p128) target = $region28
      $region27: #{cmt_stem_forward.7} parent=23 // pred_region
        %p131 = scmp.lt.s32.totalorder %s9, 1
        %s132 = scalar_select %p131, %s9, 1
        %s133 = smul.addr %s132, 4
        %s134 = smul.addr %s133, 4
        %s135 = scalar_lea.vmem %s0, %s134
      $region28: #{cmt_stem_forward.7} parent=23 // pred_fallthru
        _
    $region24: #{cmt_stem_forward.7} parent=5 // pred_fallthru
      _
    %p136 = scmp.le.s32.totalorder 1, %s9
    %p137 = scmp.lt.s32.totalorder %s9, 3
    %p138 = pnand %p136, %p137
    %p139 = pneg %p138
    // Predicated region
    $region29: #{cmt_stem_forward.7} parent=5 // pred_check
      _
    $region30: #{cmt_stem_forward.7} parent=5 // pred_check_branch
      %141 = sbr.rel (%p138) target = $region32
    $region31: #{cmt_stem_forward.7} parent=5 // pred_region
      %s142 = ssub.s32 %s9, 1
      %p143 = scmp.lt.s32.totalorder %s14, 1
      %s144 = scalar_select %p143, %s14, 1
      %s145 = smul.addr %s144, 4
      %s146 = smul.addr %s145, 4
      %s147 = scalar_lea.vmem %s0, %s146
      %p148 = pneg %p35
      %p149 = pneg %p32
      %p150 = pneg %p56
      %p151 = pneg %p53
      %p152 = pneg %p77
      %p153 = pneg %p74
      %p154 = pneg %p103
      %p155 = pneg %p100
      %p156 = scmp.lt.s32.totalorder %s14, 1
      %s157 = scalar_select %p156, %s14, 1
      %s158 = smul.addr %s157, 4
      %s159 = smul.addr %s158, 8
      %s160 = scalar_lea.vmem %s3, %s159
      %p161 = scmp.lt.s32.totalorder %s14, 1
      %s162 = scalar_select %p161, %s14, 1
      %s163 = smul.addr %s162, 4
      %s164 = smul.addr %s163, 4
      %s165 = scalar_lea.vmem %s0, %s164
      %p166 = scmp.lt.s32.totalorder %s14, 1
      %s167 = scalar_select %p166, %s14, 1
      %s168 = smul.addr %s167, 4
      %s169 = smul.addr %s168, 8
      %s170 = scalar_lea.vmem %s3, %s169
      %v171 = vld [vmem:[%s165] sm:$0xf]
      %v172 = vld [vmem:[%s165 + $0x4] sm:$0xf]
      %v173 = vld [vmem:[%s165 + $0x8] sm:$0xf]
      %v174 = vld [vmem:[%s165 + $0xc] sm:$0xf]
      %v175 = vunpack.c.l.bf16 %v171
      %v176 = vunpack.c.l.bf16 %v172
      %v177 = vunpack.c.l.bf16 %v173
      %v178 = vunpack.c.l.bf16 %v174
      %v179 = vld [vmem:[%s1] sm:$0xff]
      %v180 = vld [vmem:[%s1 + $0x8] sm:$0xff]
      %v181 = vld [vmem:[%s1 + $0x10] sm:$0xff]
      %v182 = vld [vmem:[%s1 + $0x18] sm:$0xff]
      %184 = vset.pattern.permute.xlu0 0
      %185 = vperm.xlu0 %184, %v179
      %v186 = vpop.permute.xlu0 %185
      %189 = vset.pattern.permute.xlu0 0
      %190 = vperm.xlu0 %189, %v180
      %v191 = vpop.permute.xlu0 %190
      %194 = vset.pattern.permute.xlu0 0
      %195 = vperm.xlu0 %194, %v181
      %v196 = vpop.permute.xlu0 %195
      %199 = vset.pattern.permute.xlu0 0
      %200 = vperm.xlu0 %199, %v182
      %v201 = vpop.permute.xlu0 %200
      %v203 = vmul.f32 %v175, %v186
      %v204 = vmul.f32 %v176, %v191
      %v205 = vmul.f32 %v177, %v196
      %v206 = vmul.f32 %v178, %v201
      %v207 = vld [vmem:[%s2] sm:$0xff]
      %v208 = vld [vmem:[%s2 + $0x8] sm:$0xff]
      %v209 = vld [vmem:[%s2 + $0x10] sm:$0xff]
      %v210 = vld [vmem:[%s2 + $0x18] sm:$0xff]
      %212 = vset.pattern.permute.xlu0 0
      %213 = vperm.xlu0 %212, %v207
      %v214 = vpop.permute.xlu0 %213
      %217 = vset.pattern.permute.xlu0 0
      %218 = vperm.xlu0 %217, %v208
      %v219 = vpop.permute.xlu0 %218
      %222 = vset.pattern.permute.xlu0 0
      %223 = vperm.xlu0 %222, %v209
      %v224 = vpop.permute.xlu0 %223
      %227 = vset.pattern.permute.xlu0 0
      %228 = vperm.xlu0 %227, %v210
      %v229 = vpop.permute.xlu0 %228
      %v231 = vadd.f32 %v203, %v214
      %v232 = vadd.f32 %v204, %v219
      %v233 = vadd.f32 %v205, %v224
      %v234 = vadd.f32 %v206, %v229
      %235 = vst [vmem:[%s170] sm:$0xff] %v231
      %236 = vst [vmem:[%s170 + $0x8] sm:$0xff] %v232
      %237 = vst [vmem:[%s170 + $0x10] sm:$0xff] %v233
      %238 = vst [vmem:[%s170 + $0x18] sm:$0xff] %v234
      %p239 = scmp.lt.s32.totalorder %s14, 1
      %s240 = scalar_select %p239, %s14, 1
      %s241 = smul.addr %s240, 4
      %s242 = smul.addr %s241, 8
      %s243 = scalar_lea.vmem %s3, %s242
      // Predicated region
      $region33: #{cmt_stem_forward.7} parent=31 // pred_check
        %p244 = pneg %p100
      $region34: #{cmt_stem_forward.7} parent=31 // pred_check_branch
        %246 = sbr.rel (%p244) target = $region36
      $region35: #{cmt_stem_forward.7} parent=31 // pred_region
        _
      $region36: #{cmt_stem_forward.7} parent=31 // pred_fallthru
        _
    $region32: #{cmt_stem_forward.7} parent=5 // pred_fallthru
      _
    %p247 = scmp.le.s32.totalorder 2, %s9
    // Predicated region
    $region37: #{cmt_stem_forward.7} parent=5 // pred_check
      %p248 = pneg %p247
    $region38: #{cmt_stem_forward.7} parent=5 // pred_check_branch
      %250 = sbr.rel (%p248) target = $region40
    $region39: #{cmt_stem_forward.7} parent=5 // pred_region
      %s251 = ssub.s32 %s9, 2
      // Predicated region
      $region41: #{cmt_stem_forward.7} parent=39 // pred_check
        %p252 = pneg %p106
      $region42: #{cmt_stem_forward.7} parent=39 // pred_check_branch
        %254 = sbr.rel (%p252) target = $region44
      $region43: #{cmt_stem_forward.7} parent=39 // pred_region
        %p255 = scmp.lt.s32.totalorder %s15, 1
        %s256 = scalar_select %p255, %s15, 1
        %s257 = smul.addr %s256, 4
        %s258 = smul.addr %s257, 8
        %s259 = scalar_lea.vmem %s3, %s258
      $region44: #{cmt_stem_forward.7} parent=39 // pred_fallthru
        _
    $region40: #{cmt_stem_forward.7} parent=5 // pred_fallthru
      _
  $region6: #{cmt_stem_forward.7} parent=0 // loop_footer
    %s13 = sadd.s32 1, %s9
  $region7: #{cmt_stem_forward.7} parent=0 // loop_footer_branch
    %8 = sbr.rel target = $region3
  $region8: #{cmt_stem_forward.7} parent=0 // loop_exit
    _

// kernel: cmt_stem_forward.5
$region0: #{cmt_stem_forward.5}
  #allocation0 [shape = 'u32[]', space=smem, size = 0x4, offset = 0x4, fixed_abs, tag = 'smem constant byte address 0x4 - core index']
  #allocation1 [shape = 'u32[72,128]{1,0:T(1,128)}', space=vmem, size = 0x9000, scoped, tag = 'internal scratch']
  %s0 = inlined_call_operand.vmem [shape: bf16[2,32,128], index: 0, kind: input, shape index: {}]
  %s1 = inlined_call_operand.vmem [shape: f32[1,128], index: 1, kind: input, shape index: {}]
  %s2 = inlined_call_operand.vmem [shape: f32[32,1], index: 2, kind: input, shape index: {}]
  %s3 = inlined_call_operand.vmem [shape: f32[32,1], index: 3, kind: input, shape index: {}]
  %s4 = inlined_call_operand.vmem [shape: bf16[9,32,32], index: 4, kind: input, shape index: {}]
  %s5 = inlined_call_operand.vmem [shape: bf16[2,32,128], index: 5, kind: output, shape index: {0}]
  %s6 = inlined_call_operand.vmem [shape: f32[2,32,2], index: 6, kind: output, shape index: {1}]
  %7 = xla_tuple %s5, %s6
  %s8 = sld [smem:[#allocation0]]
  $region61: #{cmt_stem_forward.5} parent=0
    _
  %s10 = ssub.s32 1, %s8
  %s11 = scalar_select 0, %s10, %s8
  loop: start=0, step=1, limit=4
  $region2: #{cmt_stem_forward.5} parent=0 // loop_pre_header
    _
  $region3: #{cmt_stem_forward.5} parent=0 // loop_header
    %s13 = sphi 0, %s17
    %p14 = scmp.ge.s32.totalorder %s13, 4
    %s23 = sphi 0, %s25
    %s26 = sphi 0, %s23
    %s27 = sphi 0, %s26
    %s43 = sphi 0, %s27
    %s47 = sphi 0, %s47
    %s49 = sphi 0, %s47
    %s50 = sphi 0, %s49
    %s64 = sphi 0, %s50
    %s68 = sphi 0, %s68
    %s70 = sphi 0, %s68
    %s71 = sphi 0, %s70
    %s85 = sphi 0, %s71
    %s89 = sphi 0, %s89
    %s91 = sphi 0, %s89
    %s92 = sphi 0, %s91
    %s106 = sphi 0, %s92
    %s110 = sphi 0, %s110
    %s112 = sphi 0, %s110
    %s113 = sphi 0, %s112
    %s127 = sphi 0, %s113
    %s133 = sphi 0, %s135
    %s136 = sphi 0, %s133
    %s137 = sphi 0, %s136
    %s153 = sphi 0, %s137
    %s159 = sphi 0, %s161
    %s162 = sphi 0, %s159
    %s163 = sphi 0, %s162
    %s179 = sphi 0, %s163
  $region4: #{cmt_stem_forward.5} parent=0 // loop_header_branch
    %16 = sbr.rel (%p14) target = $region8
  $region5: #{cmt_stem_forward.5} parent=0 // loop_body
    %s18 = ssub.s32 %s13, 1
    %s19 = ssub.s32 %s13, 2
    %s20 = sadd.s32 %s13, 1
    %s21 = ssub.s32 %s13, %s20
    %p22 = scmp.eq.s32.totalorder %s21, 0
    %s24 = sadd.s32 %s23, 1
    %s25 = scalar_select %p22, %s23, %s24
    %p28 = pneg %p22
    %p29 = scmp.eq.s32.totalorder %s13, 1
    %p30 = por %p28, %p29
    %p31 = scmp.ne.s32.totalorder %s23, %s26
    %p32 = scmp.eq.s32.totalorder %s13, 0
    %p33 = por %p31, %p32
    %p34 = scmp.ne.s32.totalorder %s23, %s26
    %p35 = scmp.eq.s32.totalorder %s18, 1
    %p36 = por %p34, %p35
    %p37 = scmp.ne.s32.totalorder %s26, %s27
    %p38 = scmp.eq.s32.totalorder %s18, 0
    %p39 = por %p37, %p38
    %p40 = scmp.ne.s32.totalorder %s26, %s27
    %p41 = scmp.eq.s32.totalorder %s19, 1
    %p42 = por %p40, %p41
    %p44 = scmp.ne.s32.totalorder %s27, %s43
    %p45 = scmp.eq.s32.totalorder %s19, 0
    %p46 = por %p44, %p45
    %s48 = sadd.s32 %s47, 1
    %p51 = scmp.eq.s32.totalorder %s13, 1
    %p52 = scmp.ne.s32.totalorder %s47, %s49
    %p53 = scmp.eq.s32.totalorder %s13, 0
    %p54 = por %p52, %p53
    %p55 = scmp.ne.s32.totalorder %s47, %s49
    %p56 = scmp.eq.s32.totalorder %s18, 1
    %p57 = por %p55, %p56
    %p58 = scmp.ne.s32.totalorder %s49, %s50
    %p59 = scmp.eq.s32.totalorder %s18, 0
    %p60 = por %p58, %p59
    %p61 = scmp.ne.s32.totalorder %s49, %s50
    %p62 = scmp.eq.s32.totalorder %s19, 1
    %p63 = por %p61, %p62
    %p65 = scmp.ne.s32.totalorder %s50, %s64
    %p66 = scmp.eq.s32.totalorder %s19, 0
    %p67 = por %p65, %p66
    %s69 = sadd.s32 %s68, 1
    %p72 = scmp.eq.s32.totalorder %s13, 1
    %p73 = scmp.ne.s32.totalorder %s68, %s70
    %p74 = scmp.eq.s32.totalorder %s13, 0
    %p75 = por %p73, %p74
    %p76 = scmp.ne.s32.totalorder %s68, %s70
    %p77 = scmp.eq.s32.totalorder %s18, 1
    %p78 = por %p76, %p77
    %p79 = scmp.ne.s32.totalorder %s70, %s71
    %p80 = scmp.eq.s32.totalorder %s18, 0
    %p81 = por %p79, %p80
    %p82 = scmp.ne.s32.totalorder %s70, %s71
    %p83 = scmp.eq.s32.totalorder %s19, 1
    %p84 = por %p82, %p83
    %p86 = scmp.ne.s32.totalorder %s71, %s85
    %p87 = scmp.eq.s32.totalorder %s19, 0
    %p88 = por %p86, %p87
    %s90 = sadd.s32 %s89, 1
    %p93 = scmp.eq.s32.totalorder %s13, 1
    %p94 = scmp.ne.s32.totalorder %s89, %s91
    %p95 = scmp.eq.s32.totalorder %s13, 0
    %p96 = por %p94, %p95
    %p97 = scmp.ne.s32.totalorder %s89, %s91
    %p98 = scmp.eq.s32.totalorder %s18, 1
    %p99 = por %p97, %p98
    %p100 = scmp.ne.s32.totalorder %s91, %s92
    %p101 = scmp.eq.s32.totalorder %s18, 0
    %p102 = por %p100, %p101
    %p103 = scmp.ne.s32.totalorder %s91, %s92
    %p104 = scmp.eq.s32.totalorder %s19, 1
    %p105 = por %p103, %p104
    %p107 = scmp.ne.s32.totalorder %s92, %s106
    %p108 = scmp.eq.s32.totalorder %s19, 0
    %p109 = por %p107, %p108
    %s111 = sadd.s32 %s110, 1
    %p114 = scmp.eq.s32.totalorder %s13, 1
    %p115 = scmp.ne.s32.totalorder %s110, %s112
    %p116 = scmp.eq.s32.totalorder %s13, 0
    %p117 = por %p115, %p116
    %p118 = scmp.ne.s32.totalorder %s110, %s112
    %p119 = scmp.eq.s32.totalorder %s18, 1
    %p120 = por %p118, %p119
    %p121 = scmp.ne.s32.totalorder %s112, %s113
    %p122 = scmp.eq.s32.totalorder %s18, 0
    %p123 = por %p121, %p122
    %p124 = scmp.ne.s32.totalorder %s112, %s113
    %p125 = scmp.eq.s32.totalorder %s19, 1
    %p126 = por %p124, %p125
    %p128 = scmp.ne.s32.totalorder %s113, %s127
    %p129 = scmp.eq.s32.totalorder %s19, 0
    %p130 = por %p128, %p129
    %s131 = ssub.s32 %s13, %s20
    %p132 = scmp.eq.s32.totalorder %s131, 0
    %s134 = sadd.s32 %s133, 1
    %s135 = scalar_select %p132, %s133, %s134
    %p138 = pneg %p132
    %p139 = scmp.eq.s32.totalorder %s13, 1
    %p140 = por %p138, %p139
    %p141 = scmp.ne.s32.totalorder %s133, %s136
    %p142 = scmp.eq.s32.totalorder %s13, 0
    %p143 = por %p141, %p142
    %p144 = scmp.ne.s32.totalorder %s133, %s136
    %p145 = scmp.eq.s32.totalorder %s18, 1
    %p146 = por %p144, %p145
    %p147 = scmp.ne.s32.totalorder %s136, %s137
    %p148 = scmp.eq.s32.totalorder %s18, 0
    %p149 = por %p147, %p148
    %p150 = scmp.ne.s32.totalorder %s136, %s137
    %p151 = scmp.eq.s32.totalorder %s19, 1
    %p152 = por %p150, %p151
    %p154 = scmp.ne.s32.totalorder %s137, %s153
    %p155 = scmp.eq.s32.totalorder %s19, 0
    %p156 = por %p154, %p155
    %s157 = ssub.s32 %s13, %s20
    %p158 = scmp.eq.s32.totalorder %s157, 0
    %s160 = sadd.s32 %s159, 1
    %s161 = scalar_select %p158, %s159, %s160
    %p164 = pneg %p158
    %p165 = scmp.eq.s32.totalorder %s13, 1
    %p166 = por %p164, %p165
    %p167 = scmp.ne.s32.totalorder %s159, %s162
    %p168 = scmp.eq.s32.totalorder %s13, 0
    %p169 = por %p167, %p168
    %p170 = scmp.ne.s32.totalorder %s159, %s162
    %p171 = scmp.eq.s32.totalorder %s18, 1
    %p172 = por %p170, %p171
    %p173 = scmp.ne.s32.totalorder %s162, %s163
    %p174 = scmp.eq.s32.totalorder %s18, 0
    %p175 = por %p173, %p174
    %p176 = scmp.ne.s32.totalorder %s162, %s163
    %p177 = scmp.eq.s32.totalorder %s19, 1
    %p178 = por %p176, %p177
    %p180 = scmp.ne.s32.totalorder %s163, %s179
    %p181 = scmp.eq.s32.totalorder %s19, 0
    %p182 = por %p180, %p181
    %p183 = scmp.le.s32.totalorder 1, %s13
    %p184 = scmp.lt.s32.totalorder %s13, 3
    %p185 = pnand %p183, %p184
    %p186 = pneg %p185
    // Predicated region
    $region9: #{cmt_stem_forward.5} parent=5 // pred_check
      _
    $region10: #{cmt_stem_forward.5} parent=5 // pred_check_branch
      %188 = sbr.rel (%p185) target = $region12
    $region11: #{cmt_stem_forward.5} parent=5 // pred_region
      %s189 = ssub.s32 %s13, 1
      // Predicated region
      $region13: #{cmt_stem_forward.5} parent=11 // pred_check
        %p190 = pneg %p60
      $region14: #{cmt_stem_forward.5} parent=11 // pred_check_branch
        %192 = sbr.rel (%p190) target = $region16
      $region15: #{cmt_stem_forward.5} parent=11 // pred_region
        _
      $region16: #{cmt_stem_forward.5} parent=11 // pred_fallthru
        _
      // Predicated region
      $region17: #{cmt_stem_forward.5} parent=11 // pred_check
        %p193 = pneg %p81
      $region18: #{cmt_stem_forward.5} parent=11 // pred_check_branch
        %195 = sbr.rel (%p193) target = $region20
      $region19: #{cmt_stem_forward.5} parent=11 // pred_region
        _
      $region20: #{cmt_stem_forward.5} parent=11 // pred_fallthru
        _
      // Predicated region
      $region21: #{cmt_stem_forward.5} parent=11 // pred_check
        %p196 = pneg %p102
      $region22: #{cmt_stem_forward.5} parent=11 // pred_check_branch
        %198 = sbr.rel (%p196) target = $region24
      $region23: #{cmt_stem_forward.5} parent=11 // pred_region
        _
      $region24: #{cmt_stem_forward.5} parent=11 // pred_fallthru
        _
      // Predicated region
      $region25: #{cmt_stem_forward.5} parent=11 // pred_check
        %p199 = pneg %p123
      $region26: #{cmt_stem_forward.5} parent=11 // pred_check_branch
        %201 = sbr.rel (%p199) target = $region28
      $region27: #{cmt_stem_forward.5} parent=11 // pred_region
        _
      $region28: #{cmt_stem_forward.5} parent=11 // pred_fallthru
        _
    $region12: #{cmt_stem_forward.5} parent=5 // pred_fallthru
      _
    %p202 = scmp.lt.s32.totalorder %s13, 2
    // Predicated region
    $region29: #{cmt_stem_forward.5} parent=5 // pred_check
      %p203 = pneg %p202
    $region30: #{cmt_stem_forward.5} parent=5 // pred_check_branch
      %205 = sbr.rel (%p203) target = $region32
    $region31: #{cmt_stem_forward.5} parent=5 // pred_region
      // Predicated region
      $region33: #{cmt_stem_forward.5} parent=31 // pred_check
        %p206 = pneg %p33
      $region34: #{cmt_stem_forward.5} parent=31 // pred_check_branch
        %208 = sbr.rel (%p206) target = $region36
      $region35: #{cmt_stem_forward.5} parent=31 // pred_region
        %p209 = scmp.lt.s32.totalorder %s13, 1
        %s210 = scalar_select %p209, %s13, 1
        %s211 = smul.addr %s210, 4
        %s212 = smul.addr %s211, 4
        %s213 = scalar_lea.vmem %s0, %s212
      $region36: #{cmt_stem_forward.5} parent=31 // pred_fallthru
        _
    $region32: #{cmt_stem_forward.5} parent=5 // pred_fallthru
      _
    %p214 = scmp.le.s32.totalorder 1, %s13
    %p215 = scmp.lt.s32.totalorder %s13, 3
    %p216 = pnand %p214, %p215
    %p217 = pneg %p216
    // Predicated region
    $region37: #{cmt_stem_forward.5} parent=5 // pred_check
      _
    $region38: #{cmt_stem_forward.5} parent=5 // pred_check_branch
      %219 = sbr.rel (%p216) target = $region40
    $region39: #{cmt_stem_forward.5} parent=5 // pred_region
      %s220 = ssub.s32 %s13, 1
      %p221 = scmp.lt.s32.totalorder %s18, 1
      %s222 = scalar_select %p221, %s18, 1
      %s223 = smul.addr %s222, 4
      %s224 = smul.addr %s223, 4
      %s225 = scalar_lea.vmem %s0, %s224
      %p226 = pneg %p39
      %p227 = pneg %p36
      %p228 = pneg %p60
      %p229 = pneg %p57
      %p230 = pneg %p81
      %p231 = pneg %p78
      %p232 = pneg %p102
      %p233 = pneg %p99
      %p234 = pneg %p123
      %p235 = pneg %p120
      %p236 = pneg %p149
      %p237 = pneg %p146
      %p238 = scmp.lt.s32.totalorder %s18, 1
      %s239 = scalar_select %p238, %s18, 1
      %s240 = smul.addr %s239, 4
      %s241 = smul.addr %s240, 4
      %s242 = scalar_lea.vmem %s5, %s241
      %p243 = pneg %p175
      %p244 = pneg %p172
      %p245 = scmp.lt.s32.totalorder %s18, 1
      %s246 = scalar_select %p245, %s18, 1
      %s247 = smul.addr %s246, 4
      %s248 = smul.addr %s247, 8
      %s249 = scalar_lea.vmem %s6, %s248
      %p250 = scmp.lt.s32.totalorder %s18, 1
      %s251 = scalar_select %p250, %s18, 1
      %s252 = smul.addr %s251, 4
      %s253 = smul.addr %s252, 4
      %s254 = scalar_lea.vmem %s0, %s253
      %p255 = scmp.lt.s32.totalorder %s18, 1
      %s256 = scalar_select %p255, %s18, 1
      %s257 = smul.addr %s256, 4
      %s258 = smul.addr %s257, 4
      %s259 = scalar_lea.vmem %s5, %s258
      %p260 = scmp.lt.s32.totalorder %s18, 1
      %s261 = scalar_select %p260, %s18, 1
      %s262 = smul.addr %s261, 4
      %s263 = smul.addr %s262, 8
      %s264 = scalar_lea.vmem %s6, %s263
      %v266 = vld [vmem:[%s1] sm:$0x1]
      %v267 = vld [vmem:[%s254] sm:$0xf]
      %v268 = vld [vmem:[%s254 + $0x4] sm:$0xf]
      %v269 = vld [vmem:[%s254 + $0x8] sm:$0xf]
      %v270 = vld [vmem:[%s254 + $0xc] sm:$0xf]
      %v271 = vunpack.c.l.bf16 %v267
      %v272 = vunpack.c.l.bf16 %v268
      %v273 = vunpack.c.l.bf16 %v269
      %v274 = vunpack.c.l.bf16 %v270
      %v275 = vld [vmem:[%s2] sm:$0xff]
      %v276 = vld [vmem:[%s2 + $0x8] sm:$0xff]
      %v277 = vld [vmem:[%s2 + $0x10] sm:$0xff]
      %v278 = vld [vmem:[%s2 + $0x18] sm:$0xff]
      %280 = vset.pattern.permute.xlu0 0
      %281 = vperm.xlu0 %280, %v275
      %v282 = vpop.permute.xlu0 %281
      %285 = vset.pattern.permute.xlu0 0
      %286 = vperm.xlu0 %285, %v276
      %v287 = vpop.permute.xlu0 %286
      %290 = vset.pattern.permute.xlu0 0
      %291 = vperm.xlu0 %290, %v277
      %v292 = vpop.permute.xlu0 %291
      %295 = vset.pattern.permute.xlu0 0
      %296 = vperm.xlu0 %295, %v278
      %v297 = vpop.permute.xlu0 %296
      %v299 = vmul.f32 %v271, %v282
      %v300 = vmul.f32 %v272, %v287
      %v301 = vmul.f32 %v273, %v292
      %v302 = vmul.f32 %v274, %v297
      %v303 = vld [vmem:[%s3] sm:$0xff]
      %v304 = vld [vmem:[%s3 + $0x8] sm:$0xff]
      %v305 = vld [vmem:[%s3 + $0x10] sm:$0xff]
      %v306 = vld [vmem:[%s3 + $0x18] sm:$0xff]
      %308 = vset.pattern.permute.xlu0 0
      %309 = vperm.xlu0 %308, %v303
      %v310 = vpop.permute.xlu0 %309
      %313 = vset.pattern.permute.xlu0 0
      %314 = vperm.xlu0 %313, %v304
      %v315 = vpop.permute.xlu0 %314
      %318 = vset.pattern.permute.xlu0 0
      %319 = vperm.xlu0 %318, %v305
      %v320 = vpop.permute.xlu0 %319
      %323 = vset.pattern.permute.xlu0 0
      %324 = vperm.xlu0 %323, %v306
      %v325 = vpop.permute.xlu0 %324
      %v328 = vperm.slane %v266, 0
      %v330 = vmul.f32 %v310, %v328
      %v331 = vmul.f32 %v315, %v328
      %v332 = vmul.f32 %v320, %v328
      %v333 = vmul.f32 %v325, %v328
      %v334 = vadd.f32 %v299, %v330
      %v335 = vadd.f32 %v300, %v331
      %v336 = vadd.f32 %v301, %v332
      %v337 = vadd.f32 %v302, %v333
      %v338 = vpack.c.bf16 %v334, %v334
      %v339 = vpack.c.bf16 %v335, %v335
      %v340 = vpack.c.bf16 %v336, %v336
      %v341 = vpack.c.bf16 %v337, %v337
      %v346 = vunpack.c.l.b16 %v338
      %v347 = vunpack.c.l.b16 %v339
      %v348 = vunpack.c.l.b16 %v340
      %v349 = vunpack.c.l.b16 %v341
      %v350 = vpack.c.b16 %v347, %v346
      %v351 = vpack.c.b16 %v349, %v348
      %352 = vrot.lane.b32.xlu0 %v350, 11
      %v353 = vpop.permute.xlu0 %352
      %354 = vrot.lane.b32.xlu0 %v351, 11
      %v355 = vpop.permute.xlu0 %354
      %vm356 = vcmask 89088
      %v359 = vsel %vm356, 0, %v353
      %v362 = vsel %vm356, 0, %v355
      %v364 = vsel %vm356, %v353, 0
      %v365 = vsel %vm356, %v355, 0
      %v366 = vld [vmem:[%s4] sm:$0xf]
      %v367 = vld [vmem:[%s4 + $0x4] sm:$0xf]
      %v368 = vld [vmem:[%s4 + $0x8] sm:$0xf]
      %v369 = vld [vmem:[%s4 + $0xc] sm:$0xf]
      %s370 = scalar_lea.vmem %s4, 16
      %v371 = vld [vmem:[%s370] sm:$0xf]
      %v372 = vld [vmem:[%s370 + $0x4] sm:$0xf]
      %v373 = vld [vmem:[%s370 + $0x8] sm:$0xf]
      %v374 = vld [vmem:[%s370 + $0xc] sm:$0xf]
      %v379 = vunpack.c.l.b16 %v371
      %v380 = vunpack.c.l.b16 %v372
      %v381 = vunpack.c.l.b16 %v373
      %v382 = vunpack.c.l.b16 %v374
      %v383 = vpack.c.b16 %v380, %v379
      %v384 = vpack.c.b16 %v382, %v381
      %389 = vrot.lane.b32.xlu0 %v359, 127
      %v390 = vpop.permute.xlu0 %389
      %391 = vrot.lane.b32.xlu0 %v364, 127
      %v392 = vpop.permute.xlu0 %391
      %393 = vrot.lane.b32.xlu0 %v362, 127
      %v394 = vpop.permute.xlu0 %393
      %395 = vrot.lane.b32.xlu0 %v365, 127
      %v396 = vpop.permute.xlu0 %395
      %vm397 = vcmask 1039360
      %v398 = vsel %vm397, %v390, %v392
      %v399 = vsel %vm397, %v394, %v396
      %vm402 = vcmask 261120
      %v404 = vsel %vm402, %v383, 0
      %v407 = vsel %vm402, %v384, 0
      %409 = vmatpush.bf16.msra.mxu0 0
      %410 = vmatpush.bf16.msra.mxu0 0
      %411 = vmatpush.bf16.msra.mxu0 0
      %412 = vmatpush.bf16.msra.mxu0 0
      %413 = vmatpush.bf16.msra.mxu0 0
      %414 = vmatpush.bf16.msra.mxu0 0
      %415 = vmatpush.bf16.msra.mxu0 %v399
      %416 = vmatpush.bf16.msra.mxu0 %v398
      %417 = vmatmul.bf16.gmra.mxu0 %v404
      %v418 = vpop.f32.mrf.mxu0
      %v419 = vadd.f32 0.0, %v418
      %v420 = vpop.f32.mrf.mxu0
      %v421 = vadd.f32 0.0, %v420
      %422 = vmatmul.bf16.gmra.mxu0 %v407
      %v423 = vpop.f32.mrf.mxu0
      %v424 = vadd.f32 0.0, %v423
      %v425 = vpop.f32.mrf.mxu0
      %v426 = vadd.f32 0.0, %v425
      %427 = vdwg.mxu0
      %v432 = vunpack.c.l.b16 %v366
      %v433 = vunpack.c.l.b16 %v367
      %v434 = vunpack.c.l.b16 %v368
      %v435 = vunpack.c.l.b16 %v369
      %v436 = vpack.c.b16 %v433, %v432
      %v437 = vpack.c.b16 %v435, %v434
      %v439 = vsel %vm402, %v436, 0
      %v442 = vsel %vm402, %v437, 0
      %444 = vmatpush.bf16.msra.mxu0 0
      %445 = vmatpush.bf16.msra.mxu0 0
      %446 = vmatpush.bf16.msra.mxu0 0
      %447 = vmatpush.bf16.msra.mxu0 0
      %448 = vmatpush.bf16.msra.mxu0 0
      %449 = vmatpush.bf16.msra.mxu0 0
      %450 = vmatpush.bf16.msra.mxu0 %v362
      %451 = vmatpush.bf16.msra.mxu0 %v359
      %452 = vmatmul.bf16.gmra.mxu0 %v439
      %v453 = vpop.f32.mrf.mxu0
      %v454 = vadd.f32 %v419, %v453
      %v455 = vpop.f32.mrf.mxu0
      %v456 = vadd.f32 %v421, %v455
      %457 = vmatmul.bf16.gmra.mxu0 %v442
      %v458 = vpop.f32.mrf.mxu0
      %v459 = vadd.f32 %v424, %v458
      %v460 = vpop.f32.mrf.mxu0
      %v461 = vadd.f32 %v426, %v460
      %462 = vdwg.mxu0
      %s463 = scalar_lea.vmem %s4, 32
      %v464 = vld [vmem:[%s463] sm:$0xf]
      %v465 = vld [vmem:[%s463 + $0x4] sm:$0xf]
      %v466 = vld [vmem:[%s463 + $0x8] sm:$0xf]
      %v467 = vld [vmem:[%s463 + $0xc] sm:$0xf]
      %v472 = vunpack.c.l.b16 %v464
      %v473 = vunpack.c.l.b16 %v465
      %v474 = vunpack.c.l.b16 %v466
      %v475 = vunpack.c.l.b16 %v467
      %v476 = vpack.c.b16 %v473, %v472
      %v477 = vpack.c.b16 %v475, %v474
      %478 = vrot.lane.b32.xlu0 %v359, 126
      %v479 = vpop.permute.xlu0 %478
      %480 = vrot.lane.b32.xlu0 %v364, 126
      %v481 = vpop.permute.xlu0 %480
      %482 = vrot.lane.b32.xlu0 %v362, 126
      %v483 = vpop.permute.xlu0 %482
      %484 = vrot.lane.b32.xlu0 %v365, 126
      %v485 = vpop.permute.xlu0 %484
      %vm486 = vcmask 1031168
      %v487 = vsel %vm486, %v479, %v481
      %v488 = vsel %vm486, %v483, %v485
      %v492 = vsel %vm402, %v476, 0
      %v495 = vsel %vm402, %v477, 0
      %497 = vmatpush.bf16.msra.mxu0 0
      %498 = vmatpush.bf16.msra.mxu0 0
      %499 = vmatpush.bf16.msra.mxu0 0
      %500 = vmatpush.bf16.msra.mxu0 0
      %501 = vmatpush.bf16.msra.mxu0 0
      %502 = vmatpush.bf16.msra.mxu0 0
      %503 = vmatpush.bf16.msra.mxu0 %v488
      %504 = vmatpush.bf16.msra.mxu0 %v487
      %505 = vmatmul.bf16.gmra.mxu0 %v492
      %v506 = vpop.f32.mrf.mxu0
      %v507 = vadd.f32 0.0, %v506
      %v508 = vpop.f32.mrf.mxu0
      %v509 = vadd.f32 0.0, %v508
      %510 = vmatmul.bf16.gmra.mxu0 %v495
      %v511 = vpop.f32.mrf.mxu0
      %v512 = vadd.f32 0.0, %v511
      %v513 = vpop.f32.mrf.mxu0
      %v514 = vadd.f32 0.0, %v513
      %515 = vdwg.mxu0
      %v516 = vadd.f32 %v454, %v507
      %v517 = vadd.f32 %v456, %v509
      %v518 = vadd.f32 %v459, %v512
      %v519 = vadd.f32 %v461, %v514
      %s520 = scalar_lea.vmem %s4, 48
      %v521 = vld [vmem:[%s520] sm:$0xf]
      %v522 = vld [vmem:[%s520 + $0x4] sm:$0xf]
      %v523 = vld [vmem:[%s520 + $0x8] sm:$0xf]
      %v524 = vld [vmem:[%s520 + $0xc] sm:$0xf]
      %v529 = vunpack.c.l.b16 %v521
      %v530 = vunpack.c.l.b16 %v522
      %v531 = vunpack.c.l.b16 %v523
      %v532 = vunpack.c.l.b16 %v524
      %v533 = vpack.c.b16 %v530, %v529
      %v534 = vpack.c.b16 %v532, %v531
      %535 = vrot.lane.b32.xlu0 %v359, 118
      %v536 = vpop.permute.xlu0 %535
      %537 = vrot.lane.b32.xlu0 %v364, 118
      %v538 = vpop.permute.xlu0 %537
      %539 = vrot.lane.b32.xlu0 %v362, 118
      %v540 = vpop.permute.xlu0 %539
      %541 = vrot.lane.b32.xlu0 %v365, 118
      %v542 = vpop.permute.xlu0 %541
      %vm543 = vcmask 965632
      %v544 = vsel %vm543, %v536, %v538
      %v545 = vsel %vm543, %v540, %v542
      %v549 = vsel %vm402, %v533, 0
      %v552 = vsel %vm402, %v534, 0
      %554 = vmatpush.bf16.msra.mxu0 0
      %555 = vmatpush.bf16.msra.mxu0 0
      %556 = vmatpush.bf16.msra.mxu0 0
      %557 = vmatpush.bf16.msra.mxu0 0
      %558 = vmatpush.bf16.msra.mxu0 0
      %559 = vmatpush.bf16.msra.mxu0 0
      %560 = vmatpush.bf16.msra.mxu0 %v545
      %561 = vmatpush.bf16.msra.mxu0 %v544
      %562 = vmatmul.bf16.gmra.mxu0 %v549
      %v563 = vpop.f32.mrf.mxu0
      %v564 = vadd.f32 0.0, %v563
      %v565 = vpop.f32.mrf.mxu0
      %v566 = vadd.f32 0.0, %v565
      %567 = vmatmul.bf16.gmra.mxu0 %v552
      %v568 = vpop.f32.mrf.mxu0
      %v569 = vadd.f32 0.0, %v568
      %v570 = vpop.f32.mrf.mxu0
      %v571 = vadd.f32 0.0, %v570
      %572 = vdwg.mxu0
      %v573 = vadd.f32 %v516, %v564
      %v574 = vadd.f32 %v517, %v566
      %v575 = vadd.f32 %v518, %v569
      %v576 = vadd.f32 %v519, %v571
      %s577 = scalar_lea.vmem %s4, 64
      %v578 = vld [vmem:[%s577] sm:$0xf]
      %v579 = vld [vmem:[%s577 + $0x4] sm:$0xf]
      %v580 = vld [vmem:[%s577 + $0x8] sm:$0xf]
      %v581 = vld [vmem:[%s577 + $0xc] sm:$0xf]
      %v586 = vunpack.c.l.b16 %v578
      %v587 = vunpack.c.l.b16 %v579
      %v588 = vunpack.c.l.b16 %v580
      %v589 = vunpack.c.l.b16 %v581
      %v590 = vpack.c.b16 %v587, %v586
      %v591 = vpack.c.b16 %v589, %v588
      %592 = vrot.lane.b32.xlu0 %v359, 117
      %v593 = vpop.permute.xlu0 %592
      %594 = vrot.lane.b32.xlu0 %v364, 117
      %v595 = vpop.permute.xlu0 %594
      %596 = vrot.lane.b32.xlu0 %v362, 117
      %v597 = vpop.permute.xlu0 %596
      %598 = vrot.lane.b32.xlu0 %v365, 117
      %v599 = vpop.permute.xlu0 %598
      %vm600 = vcmask 957440
      %v601 = vsel %vm600, %v593, %v595
      %v602 = vsel %vm600, %v597, %v599
      %v606 = vsel %vm402, %v590, 0
      %v609 = vsel %vm402, %v591, 0
      %611 = vmatpush.bf16.msra.mxu0 0
      %612 = vmatpush.bf16.msra.mxu0 0
      %613 = vmatpush.bf16.msra.mxu0 0
      %614 = vmatpush.bf16.msra.mxu0 0
      %615 = vmatpush.bf16.msra.mxu0 0
      %616 = vmatpush.bf16.msra.mxu0 0
      %617 = vmatpush.bf16.msra.mxu0 %v602
      %618 = vmatpush.bf16.msra.mxu0 %v601
      %619 = vmatmul.bf16.gmra.mxu0 %v606
      %v620 = vpop.f32.mrf.mxu0
      %v621 = vadd.f32 0.0, %v620
      %v622 = vpop.f32.mrf.mxu0
      %v623 = vadd.f32 0.0, %v622
      %624 = vmatmul.bf16.gmra.mxu0 %v609
      %v625 = vpop.f32.mrf.mxu0
      %v626 = vadd.f32 0.0, %v625
      %v627 = vpop.f32.mrf.mxu0
      %v628 = vadd.f32 0.0, %v627
      %629 = vdwg.mxu0
      %v630 = vadd.f32 %v573, %v621
      %v631 = vadd.f32 %v574, %v623
      %v632 = vadd.f32 %v575, %v626
      %v633 = vadd.f32 %v576, %v628
      %s634 = scalar_lea.vmem %s4, 80
      %v635 = vld [vmem:[%s634] sm:$0xf]
      %v636 = vld [vmem:[%s634 + $0x4] sm:$0xf]
      %v637 = vld [vmem:[%s634 + $0x8] sm:$0xf]
      %v638 = vld [vmem:[%s634 + $0xc] sm:$0xf]
      %v643 = vunpack.c.l.b16 %v635
      %v644 = vunpack.c.l.b16 %v636
      %v645 = vunpack.c.l.b16 %v637
      %v646 = vunpack.c.l.b16 %v638
      %v647 = vpack.c.b16 %v644, %v643
      %v648 = vpack.c.b16 %v646, %v645
      %649 = vrot.lane.b32.xlu0 %v359, 116
      %v650 = vpop.permute.xlu0 %649
      %651 = vrot.lane.b32.xlu0 %v364, 116
      %v652 = vpop.permute.xlu0 %651
      %653 = vrot.lane.b32.xlu0 %v362, 116
      %v654 = vpop.permute.xlu0 %653
      %655 = vrot.lane.b32.xlu0 %v365, 116
      %v656 = vpop.permute.xlu0 %655
      %vm657 = vcmask 949248
      %v658 = vsel %vm657, %v650, %v652
      %v659 = vsel %vm657, %v654, %v656
      %v663 = vsel %vm402, %v647, 0
      %v666 = vsel %vm402, %v648, 0
      %668 = vmatpush.bf16.msra.mxu0 0
      %669 = vmatpush.bf16.msra.mxu0 0
      %670 = vmatpush.bf16.msra.mxu0 0
      %671 = vmatpush.bf16.msra.mxu0 0
      %672 = vmatpush.bf16.msra.mxu0 0
      %673 = vmatpush.bf16.msra.mxu0 0
      %674 = vmatpush.bf16.msra.mxu0 %v659
      %675 = vmatpush.bf16.msra.mxu0 %v658
      %676 = vmatmul.bf16.gmra.mxu0 %v663
      %v677 = vpop.f32.mrf.mxu0
      %v678 = vadd.f32 0.0, %v677
      %v679 = vpop.f32.mrf.mxu0
      %v680 = vadd.f32 0.0, %v679
      %681 = vmatmul.bf16.gmra.mxu0 %v666
      %v682 = vpop.f32.mrf.mxu0
      %v683 = vadd.f32 0.0, %v682
      %v684 = vpop.f32.mrf.mxu0
      %v685 = vadd.f32 0.0, %v684
      %686 = vdwg.mxu0
      %v687 = vadd.f32 %v630, %v678
      %v688 = vadd.f32 %v631, %v680
      %v689 = vadd.f32 %v632, %v683
      %v690 = vadd.f32 %v633, %v685
      %s691 = scalar_lea.vmem %s4, 96
      %v692 = vld [vmem:[%s691] sm:$0xf]
      %v693 = vld [vmem:[%s691 + $0x4] sm:$0xf]
      %v694 = vld [vmem:[%s691 + $0x8] sm:$0xf]
      %v695 = vld [vmem:[%s691 + $0xc] sm:$0xf]
      %v700 = vunpack.c.l.b16 %v692
      %v701 = vunpack.c.l.b16 %v693
      %v702 = vunpack.c.l.b16 %v694
      %v703 = vunpack.c.l.b16 %v695
      %v704 = vpack.c.b16 %v701, %v700
      %v705 = vpack.c.b16 %v703, %v702
      %706 = vrot.lane.b32.xlu0 %v359, 108
      %v707 = vpop.permute.xlu0 %706
      %708 = vrot.lane.b32.xlu0 %v364, 108
      %v709 = vpop.permute.xlu0 %708
      %710 = vrot.lane.b32.xlu0 %v362, 108
      %v711 = vpop.permute.xlu0 %710
      %712 = vrot.lane.b32.xlu0 %v365, 108
      %v713 = vpop.permute.xlu0 %712
      %vm714 = vcmask 883712
      %v715 = vsel %vm714, %v707, %v709
      %v716 = vsel %vm714, %v711, %v713
      %v720 = vsel %vm402, %v704, 0
      %v723 = vsel %vm402, %v705, 0
      %725 = vmatpush.bf16.msra.mxu0 0
      %726 = vmatpush.bf16.msra.mxu0 0
      %727 = vmatpush.bf16.msra.mxu0 0
      %728 = vmatpush.bf16.msra.mxu0 0
      %729 = vmatpush.bf16.msra.mxu0 0
      %730 = vmatpush.bf16.msra.mxu0 0
      %731 = vmatpush.bf16.msra.mxu0 %v716
      %732 = vmatpush.bf16.msra.mxu0 %v715
      %733 = vmatmul.bf16.gmra.mxu0 %v720
      %v734 = vpop.f32.mrf.mxu0
      %v735 = vadd.f32 0.0, %v734
      %v736 = vpop.f32.mrf.mxu0
      %v737 = vadd.f32 0.0, %v736
      %738 = vmatmul.bf16.gmra.mxu0 %v723
      %v739 = vpop.f32.mrf.mxu0
      %v740 = vadd.f32 0.0, %v739
      %v741 = vpop.f32.mrf.mxu0
      %v742 = vadd.f32 0.0, %v741
      %743 = vdwg.mxu0
      %v744 = vadd.f32 %v687, %v735
      %v745 = vadd.f32 %v688, %v737
      %v746 = vadd.f32 %v689, %v740
      %v747 = vadd.f32 %v690, %v742
      %s748 = scalar_lea.vmem %s4, 112
      %v749 = vld [vmem:[%s748] sm:$0xf]
      %v750 = vld [vmem:[%s748 + $0x4] sm:$0xf]
      %v751 = vld [vmem:[%s748 + $0x8] sm:$0xf]
      %v752 = vld [vmem:[%s748 + $0xc] sm:$0xf]
      %v757 = vunpack.c.l.b16 %v749
      %v758 = vunpack.c.l.b16 %v750
      %v759 = vunpack.c.l.b16 %v751
      %v760 = vunpack.c.l.b16 %v752
      %v761 = vpack.c.b16 %v758, %v757
      %v762 = vpack.c.b16 %v760, %v759
      %763 = vrot.lane.b32.xlu0 %v359, 107
      %v764 = vpop.permute.xlu0 %763
      %765 = vrot.lane.b32.xlu0 %v364, 107
      %v766 = vpop.permute.xlu0 %765
      %767 = vrot.lane.b32.xlu0 %v362, 107
      %v768 = vpop.permute.xlu0 %767
      %769 = vrot.lane.b32.xlu0 %v365, 107
      %v770 = vpop.permute.xlu0 %769
      %vm771 = vcmask 875520
      %v772 = vsel %vm771, %v764, %v766
      %v773 = vsel %vm771, %v768, %v770
      %v777 = vsel %vm402, %v761, 0
      %v780 = vsel %vm402, %v762, 0
      %782 = vmatpush.bf16.msra.mxu0 0
      %783 = vmatpush.bf16.msra.mxu0 0
      %784 = vmatpush.bf16.msra.mxu0 0
      %785 = vmatpush.bf16.msra.mxu0 0
      %786 = vmatpush.bf16.msra.mxu0 0
      %787 = vmatpush.bf16.msra.mxu0 0
      %788 = vmatpush.bf16.msra.mxu0 %v773
      %789 = vmatpush.bf16.msra.mxu0 %v772
      %790 = vmatmul.bf16.gmra.mxu0 %v777
      %v791 = vpop.f32.mrf.mxu0
      %v792 = vadd.f32 0.0, %v791
      %v793 = vpop.f32.mrf.mxu0
      %v794 = vadd.f32 0.0, %v793
      %795 = vmatmul.bf16.gmra.mxu0 %v780
      %v796 = vpop.f32.mrf.mxu0
      %v797 = vadd.f32 0.0, %v796
      %v798 = vpop.f32.mrf.mxu0
      %v799 = vadd.f32 0.0, %v798
      %800 = vdwg.mxu0
      %v801 = vadd.f32 %v744, %v792
      %v802 = vadd.f32 %v745, %v794
      %v803 = vadd.f32 %v746, %v797
      %v804 = vadd.f32 %v747, %v799
      %s805 = scalar_lea.vmem %s4, 128
      %v806 = vld [vmem:[%s805] sm:$0xf]
      %v807 = vld [vmem:[%s805 + $0x4] sm:$0xf]
      %v808 = vld [vmem:[%s805 + $0x8] sm:$0xf]
      %v809 = vld [vmem:[%s805 + $0xc] sm:$0xf]
      %v814 = vunpack.c.l.b16 %v806
      %v815 = vunpack.c.l.b16 %v807
      %v816 = vunpack.c.l.b16 %v808
      %v817 = vunpack.c.l.b16 %v809
      %v818 = vpack.c.b16 %v815, %v814
      %v819 = vpack.c.b16 %v817, %v816
      %820 = vrot.lane.b32.xlu0 %v359, 106
      %v821 = vpop.permute.xlu0 %820
      %822 = vrot.lane.b32.xlu0 %v364, 106
      %v823 = vpop.permute.xlu0 %822
      %824 = vrot.lane.b32.xlu0 %v362, 106
      %v825 = vpop.permute.xlu0 %824
      %826 = vrot.lane.b32.xlu0 %v365, 106
      %v827 = vpop.permute.xlu0 %826
      %vm828 = vcmask 867328
      %v829 = vsel %vm828, %v821, %v823
      %v830 = vsel %vm828, %v825, %v827
      %v834 = vsel %vm402, %v818, 0
      %v837 = vsel %vm402, %v819, 0
      %839 = vmatpush.bf16.msra.mxu0 0
      %840 = vmatpush.bf16.msra.mxu0 0
      %841 = vmatpush.bf16.msra.mxu0 0
      %842 = vmatpush.bf16.msra.mxu0 0
      %843 = vmatpush.bf16.msra.mxu0 0
      %844 = vmatpush.bf16.msra.mxu0 0
      %845 = vmatpush.bf16.msra.mxu0 %v830
      %846 = vmatpush.bf16.msra.mxu0 %v829
      %847 = vmatmul.bf16.gmra.mxu0 %v834
      %v848 = vpop.f32.mrf.mxu0
      %v849 = vadd.f32 0.0, %v848
      %v850 = vpop.f32.mrf.mxu0
      %v851 = vadd.f32 0.0, %v850
      %852 = vmatmul.bf16.gmra.mxu0 %v837
      %v853 = vpop.f32.mrf.mxu0
      %v854 = vadd.f32 0.0, %v853
      %v855 = vpop.f32.mrf.mxu0
      %v856 = vadd.f32 0.0, %v855
      %857 = vdwg.mxu0
      %v858 = vadd.f32 %v801, %v849
      %v859 = vadd.f32 %v802, %v851
      %v860 = vadd.f32 %v803, %v854
      %v861 = vadd.f32 %v804, %v856
      %v862 = vand.u32 2147483647, %v858
      %v863 = vand.u32 2147483647, %v859
      %v864 = vand.u32 2147483647, %v860
      %v865 = vand.u32 2147483647, %v861
      %v866 = vmul.f32 %v862, 0.70710677
      %v867 = vmul.f32 %v863, 0.70710677
      %v868 = vmul.f32 %v864, 0.70710677
      %v869 = vmul.f32 %v865, 0.70710677
      %v870 = vmul.f32 %v866, 0.3275911
      %v871 = vmul.f32 %v867, 0.3275911
      %v872 = vmul.f32 %v868, 0.3275911
      %v873 = vmul.f32 %v869, 0.3275911
      %v874 = vadd.f32 %v870, 1.0
      %v875 = vadd.f32 %v871, 1.0
      %v876 = vadd.f32 %v872, 1.0
      %v877 = vadd.f32 %v873, 1.0
      %v878 = vrcp.pop %v874
      %v879 = vrcp.pop %v875
      %v880 = vrcp.pop %v876
      %v881 = vrcp.pop %v877
      %v882 = vmul.f32 %v878, 1.0614054
      %v883 = vmul.f32 %v879, 1.0614054
      %v884 = vmul.f32 %v880, 1.0614054
      %v885 = vmul.f32 %v881, 1.0614054
      %v886 = vadd.f32 %v882, -1.4531521
      %v887 = vadd.f32 %v883, -1.4531521
      %v888 = vadd.f32 %v884, -1.4531521
      %v889 = vadd.f32 %v885, -1.4531521
      %v890 = vmul.f32 %v886, %v878
      %v891 = vmul.f32 %v887, %v879
      %v892 = vmul.f32 %v888, %v880
      %v893 = vmul.f32 %v889, %v881
      %v894 = vadd.f32 %v890, 1.4214138
      %v895 = vadd.f32 %v891, 1.4214138
      %v896 = vadd.f32 %v892, 1.4214138
      %v897 = vadd.f32 %v893, 1.4214138
      %v898 = vmul.f32 %v894, %v878
      %v899 = vmul.f32 %v895, %v879
      %v900 = vmul.f32 %v896, %v880
      %v901 = vmul.f32 %v897, %v881
      %v902 = vadd.f32 %v898, -0.28449672
      %v903 = vadd.f32 %v899, -0.28449672
      %v904 = vadd.f32 %v900, -0.28449672
      %v905 = vadd.f32 %v901, -0.28449672
      %v906 = vmul.f32 %v902, %v878
      %v907 = vmul.f32 %v903, %v879
      %v908 = vmul.f32 %v904, %v880
      %v909 = vmul.f32 %v905, %v881
      %v910 = vadd.f32 %v906, 0.2548296
      %v911 = vadd.f32 %v907, 0.2548296
      %v912 = vadd.f32 %v908, 0.2548296
      %v913 = vadd.f32 %v909, 0.2548296
      %v914 = vmul.f32 %v910, %v878
      %v915 = vmul.f32 %v911, %v879
      %v916 = vmul.f32 %v912, %v880
      %v917 = vmul.f32 %v913, %v881
      %v918 = vsub.f32 0.0, %v866
      %v919 = vsub.f32 0.0, %v867
      %v920 = vsub.f32 0.0, %v868
      %v921 = vsub.f32 0.0, %v869
      %v922 = vmul.f32 %v918, %v866
      %v923 = vmul.f32 %v919, %v867
      %v924 = vmul.f32 %v920, %v868
      %v925 = vmul.f32 %v921, %v869
      %v926 = vmul.f32 %v922, 1.442695
      %v927 = vpow.pop %v926
      %v928 = vmul.f32 %v923, 1.442695
      %v929 = vpow.pop %v928
      %v930 = vmul.f32 %v924, 1.442695
      %v931 = vpow.pop %v930
      %v932 = vmul.f32 %v925, 1.442695
      %v933 = vpow.pop %v932
      %v934 = vmul.f32 %v914, %v927
      %v935 = vmul.f32 %v915, %v929
      %v936 = vmul.f32 %v916, %v931
      %v937 = vmul.f32 %v917, %v933
      %v938 = vsub.f32 1.0, %v934
      %v939 = vsub.f32 1.0, %v935
      %v940 = vsub.f32 1.0, %v936
      %v941 = vsub.f32 1.0, %v937
      %v942 = vmul.f32 %v862, %v938
      %v943 = vmul.f32 %v863, %v939
      %v944 = vmul.f32 %v864, %v940
      %v945 = vmul.f32 %v865, %v941
      %v946 = vadd.f32 %v858, %v942
      %v947 = vadd.f32 %v859, %v943
      %v948 = vadd.f32 %v860, %v944
      %v949 = vadd.f32 %v861, %v945
      %v950 = vmul.f32 %v946, 0.5
      %v951 = vmul.f32 %v947, 0.5
      %v952 = vmul.f32 %v948, 0.5
      %v953 = vmul.f32 %v949, 0.5
      %v954 = vmul.f32 %v950, %v328
      %v955 = vmul.f32 %v951, %v328
      %v956 = vmul.f32 %v952, %v328
      %v957 = vmul.f32 %v953, %v328
      %v958 = vpack.c.bf16 %v954, %v954
      %v959 = vpack.c.bf16 %v955, %v955
      %v960 = vpack.c.bf16 %v956, %v956
      %v961 = vpack.c.bf16 %v957, %v957
      %962 = vst [vmem:[%s259] sm:$0xf] %v958
      %963 = vst [vmem:[%s259 + $0x4] sm:$0xf] %v959
      %964 = vst [vmem:[%s259 + $0x8] sm:$0xf] %v960
      %965 = vst [vmem:[%s259 + $0xc] sm:$0xf] %v961
      %966 = vadd.xlane.f32.xlu0 %v954
      %v967 = vpop.xlane.xlu0 %966
      %968 = vadd.xlane.f32.xlu0 %v955
      %v969 = vpop.xlane.xlu0 %968
      %970 = vadd.xlane.f32.xlu0 %v956
      %v971 = vpop.xlane.xlu0 %970
      %972 = vadd.xlane.f32.xlu0 %v957
      %v973 = vpop.xlane.xlu0 %972
      %vm974 = vcmask 7168
      %975 = vst.msk [vmem:[%s264] sm:$0xff] %vm974, %v967
      %976 = vst.msk [vmem:[%s264 + $0x8] sm:$0xff] %vm974, %v969
      %977 = vst.msk [vmem:[%s264 + $0x10] sm:$0xff] %vm974, %v971
      %978 = vst.msk [vmem:[%s264 + $0x18] sm:$0xff] %vm974, %v973
      %v979 = vmul.f32 %v954, %v954
      %v980 = vmul.f32 %v955, %v955
      %v981 = vmul.f32 %v956, %v956
      %v982 = vmul.f32 %v957, %v957
      %983 = vadd.xlane.f32.xlu0 %v979
      %v984 = vpop.xlane.xlu0 %983
      %985 = vadd.xlane.f32.xlu0 %v980
      %v986 = vpop.xlane.xlu0 %985
      %987 = vadd.xlane.f32.xlu0 %v981
      %v988 = vpop.xlane.xlu0 %987
      %989 = vadd.xlane.f32.xlu0 %v982
      %v990 = vpop.xlane.xlu0 %989
      %vm991 = vcmask 15368
      %992 = vst.msk [vmem:[%s264] sm:$0xff] %vm991, %v984
      %993 = vst.msk [vmem:[%s264 + $0x8] sm:$0xff] %vm991, %v986
      %994 = vst.msk [vmem:[%s264 + $0x10] sm:$0xff] %vm991, %v988
      %995 = vst.msk [vmem:[%s264 + $0x18] sm:$0xff] %vm991, %v990
      %p996 = scmp.lt.s32.totalorder %s18, 1
      %s997 = scalar_select %p996, %s18, 1
      %s998 = smul.addr %s997, 4
      %s999 = smul.addr %s998, 4
      %s1000 = scalar_lea.vmem %s5, %s999
      %p1001 = scmp.lt.s32.totalorder %s18, 1
      %s1002 = scalar_select %p1001, %s18, 1
      %s1003 = smul.addr %s1002, 4
      %s1004 = smul.addr %s1003, 8
      %s1005 = scalar_lea.vmem %s6, %s1004
      // Predicated region
      $region41: #{cmt_stem_forward.5} parent=39 // pred_check
        %p1006 = pneg %p146
      $region42: #{cmt_stem_forward.5} parent=39 // pred_check_branch
        %1008 = sbr.rel (%p1006) target = $region44
      $region43: #{cmt_stem_forward.5} parent=39 // pred_region
        _
      $region44: #{cmt_stem_forward.5} parent=39 // pred_fallthru
        _
      // Predicated region
      $region45: #{cmt_stem_forward.5} parent=39 // pred_check
        %p1009 = pneg %p172
      $region46: #{cmt_stem_forward.5} parent=39 // pred_check_branch
        %1011 = sbr.rel (%p1009) target = $region48
      $region47: #{cmt_stem_forward.5} parent=39 // pred_region
        _
      $region48: #{cmt_stem_forward.5} parent=39 // pred_fallthru
        _
    $region40: #{cmt_stem_forward.5} parent=5 // pred_fallthru
      _
    %p1012 = scmp.le.s32.totalorder 2, %s13
    // Predicated region
    $region49: #{cmt_stem_forward.5} parent=5 // pred_check
      %p1013 = pneg %p1012
    $region50: #{cmt_stem_forward.5} parent=5 // pred_check_branch
      %1015 = sbr.rel (%p1013) target = $region52
    $region51: #{cmt_stem_forward.5} parent=5 // pred_region
      %s1016 = ssub.s32 %s13, 2
      // Predicated region
      $region53: #{cmt_stem_forward.5} parent=51 // pred_check
        %p1017 = pneg %p152
      $region54: #{cmt_stem_forward.5} parent=51 // pred_check_branch
        %1019 = sbr.rel (%p1017) target = $region56
      $region55: #{cmt_stem_forward.5} parent=51 // pred_region
        %p1020 = scmp.lt.s32.totalorder %s19, 1
        %s1021 = scalar_select %p1020, %s19, 1
        %s1022 = smul.addr %s1021, 4
        %s1023 = smul.addr %s1022, 4
        %s1024 = scalar_lea.vmem %s5, %s1023
      $region56: #{cmt_stem_forward.5} parent=51 // pred_fallthru
        _
      // Predicated region
      $region57: #{cmt_stem_forward.5} parent=51 // pred_check
        %p1025 = pneg %p178
      $region58: #{cmt_stem_forward.5} parent=51 // pred_check_branch
        %1027 = sbr.rel (%p1025) target = $region60
      $region59: #{cmt_stem_forward.5} parent=51 // pred_region
        %p1028 = scmp.lt.s32.totalorder %s19, 1
        %s1029 = scalar_select %p1028, %s19, 1
        %s1030 = smul.addr %s1029, 4
        %s1031 = smul.addr %s1030, 8
        %s1032 = scalar_lea.vmem %s6, %s1031
      $region60: #{cmt_stem_forward.5} parent=51 // pred_fallthru
        _
    $region52: #{cmt_stem_forward.5} parent=5 // pred_fallthru
      _
  $region6: #{cmt_stem_forward.5} parent=0 // loop_footer
    %s17 = sadd.s32 1, %s13
  $region7: #{cmt_stem_forward.5} parent=0 // loop_footer_branch
    %12 = sbr.rel target = $region3
  $region8: #{cmt_stem_forward.5} parent=0 // loop_exit
    _

</llo_original>
